<compile_context>
chip_gen: v6e
topology: v6e:2x2x1
jax: 0.10.0
libtpu: 0.0.40
codegen_flags: <defaults>
</compile_context>

<pallas_src>
import jax
import jax.numpy as jnp
from jax.experimental import pallas as pl
from jax.experimental.pallas import tpu as pltpu


def _round_up(n, m):
    return ((n + m - 1) // m) * m


def mlp_rgb_kernel(x_ref,
                   w1_ref, b1_ref,
                   w2_ref, b2_ref,
                   w3_ref, b3_ref,
                   w4_ref, b4_ref,
                   w5_ref, b5_ref,
                   o_ref):
    # fc1 -> relu   (bf16 inputs, f32 accumulation; bias-add + ReLU on the VPU)
    h = jnp.dot(x_ref[...], w1_ref[...], preferred_element_type=jnp.float32)
    h = jnp.maximum(h + b1_ref[...], 0.0).astype(jnp.bfloat16)
    # fc2 -> relu
    h = jnp.dot(h, w2_ref[...], preferred_element_type=jnp.float32)
    h = jnp.maximum(h + b2_ref[...], 0.0).astype(jnp.bfloat16)
    # fc3 -> relu
    h = jnp.dot(h, w3_ref[...], preferred_element_type=jnp.float32)
    h = jnp.maximum(h + b3_ref[...], 0.0).astype(jnp.bfloat16)
    # fc4 -> relu
    h = jnp.dot(h, w4_ref[...], preferred_element_type=jnp.float32)
    h = jnp.maximum(h + b4_ref[...], 0.0).astype(jnp.bfloat16)
    # fc5 (no activation) -- output columns are padded to a lane-dense 128
    h = jnp.dot(h, w5_ref[...], preferred_element_type=jnp.float32)
    o_ref[...] = (h + b5_ref[...]).astype(o_ref.dtype)


def mlp_rgb_forward(x_nchw, params, *, tile_b=256):
    """x_nchw: [B, C, H, W] float32.  params: dict of (W_t [in,out], b [1,out])."""
    B = x_nchw.shape[0]
    x_flat = x_nchw.reshape(B, -1).astype(jnp.bfloat16)   # torch.flatten(x, 1)
    input_dim = x_flat.shape[1]

    (w1, b1), (w2, b2), (w3, b3), (w4, b4), (w5, b5) = (
        params["fc1"], params["fc2"], params["fc3"], params["fc4"], params["fc5"]
    )
    out_dim = w5.shape[1]

    # --- batch tiling: pad B up to a multiple of the tile (>= 16 rows) -------
    tile_b = min(tile_b, _round_up(B, 16))
    grid_b = pl.cdiv(B, tile_b)
    b_pad = grid_b * tile_b
    if b_pad != B:
        x_flat = jnp.pad(x_flat, ((0, b_pad - B), (0, 0)))

    # --- lane-dense output: pad fc5 columns 3 -> 128 (zeros) -----------------
    out_pad = _round_up(max(out_dim, 128), 128)
    w5p = jnp.pad(w5, ((0, 0), (0, out_pad - out_dim)))
    b5p = jnp.pad(b5, ((0, 0), (0, out_pad - out_dim)))

    # --- weights as bf16 (cast once, in the wrapper); biases stay f32 --------
    bf = lambda w: w.astype(jnp.bfloat16)
    weights = (bf(w1), b1, bf(w2), b2, bf(w3), b3, bf(w4), b4, bf(w5p), b5p)

    x_spec = pl.BlockSpec((tile_b, input_dim), lambda i: (i, 0))
    out_spec = pl.BlockSpec((tile_b, out_pad), lambda i: (i, 0))
    # Weights / biases: full block, constant index_map -> resident across steps.
    resident = lambda a: pl.BlockSpec(a.shape, lambda i: (0, 0))

    out_padded = pl.pallas_call(
        mlp_rgb_kernel,
        out_shape=jax.ShapeDtypeStruct((b_pad, out_pad), jnp.float32),
        grid=(grid_b,),
        in_specs=[x_spec] + [resident(a) for a in weights],
        out_specs=out_spec,
        compiler_params=pltpu.CompilerParams(
            dimension_semantics=("parallel",),
            vmem_limit_bytes=48 * 1024 * 1024,
        ),
    )(x_flat, *weights)

    return out_padded[:B, :out_dim]


def init_params(key, input_dim, hidden_dim1, hidden_dim2, output_dim):
    """Deterministic init mirroring nn.Linear shapes.
    Stored pre-transposed: W_t is [in_dim, out_dim]; bias is [1, out_dim]."""
    dims = [(input_dim, hidden_dim1),
            (hidden_dim1, hidden_dim1),
            (hidden_dim1, hidden_dim2),
            (hidden_dim2, hidden_dim2),
            (hidden_dim2, output_dim)]
    params = {}
    for i, (din, dout) in enumerate(dims, start=1):
        key, kw, kb = jax.random.split(key, 3)
        bound = 1.0 / jnp.sqrt(float(din))  # PyTorch default U(-1/sqrt(in), 1/sqrt(in))
        w_t = jax.random.uniform(kw, (din, dout), jnp.float32, -bound, bound)
        b = jax.random.uniform(kb, (1, dout), jnp.float32, -bound, bound)
        params[f"fc{i}"] = (w_t, b)
    return params


if __name__ == "__main__":
    key = jax.random.PRNGKey(0)
    k_x, k_p = jax.random.split(key)

    # small, MLP_RGB-consistent shapes
    B, C, H, W = 2, 4, 16, 16
    input_dim = C * H * W          # 1024 (flattened)
    hidden_dim1 = 256
    hidden_dim2 = 128
    output_dim = 3                 # RGB

    x = jax.random.normal(k_x, (B, C, H, W), jnp.float32)
    params = init_params(k_p, input_dim, hidden_dim1, hidden_dim2, output_dim)

    out = mlp_rgb_forward(x, params)
    out = jax.block_until_ready(out)
    assert out.shape == (B, output_dim)

    # Reference check (plain JAX mirroring the kernel's bf16/f32-accum arithmetic).
    h = x.reshape(B, -1).astype(jnp.bfloat16)
    for name in ["fc1", "fc2", "fc3", "fc4"]:
        w_t, b = params[name]
        h = jnp.dot(h, w_t.astype(jnp.bfloat16), preferred_element_type=jnp.float32)
        h = jnp.maximum(h + b, 0.0).astype(jnp.bfloat16)
    w_t, b = params["fc5"]
    ref = jnp.dot(h, w_t.astype(jnp.bfloat16), preferred_element_type=jnp.float32) + b
    assert jnp.allclose(out, ref, atol=1e-2, rtol=1e-2), (
        f"mismatch: max abs err {jnp.max(jnp.abs(out - ref))}")

    print("KERNEL_OK")
</pallas_src>

<mosaic_0001>
module attributes {stable_mosaic.version = 11 : i64} {
  func.func @mlp_rgb_kernel(%arg0: i32, %arg1: memref<16x1024xbf16, #tpu.memory_space<vmem>>, %arg2: memref<1024x256xbf16, #tpu.memory_space<vmem>>, %arg3: memref<1x256xf32, #tpu.memory_space<vmem>>, %arg4: memref<256x256xbf16, #tpu.memory_space<vmem>>, %arg5: memref<1x256xf32, #tpu.memory_space<vmem>>, %arg6: memref<256x128xbf16, #tpu.memory_space<vmem>>, %arg7: memref<1x128xf32, #tpu.memory_space<vmem>>, %arg8: memref<128x128xbf16, #tpu.memory_space<vmem>>, %arg9: memref<1x128xf32, #tpu.memory_space<vmem>>, %arg10: memref<128x128xbf16, #tpu.memory_space<vmem>>, %arg11: memref<1x128xf32, #tpu.memory_space<vmem>>, %arg12: memref<16x128xf32, #tpu.memory_space<vmem>>) attributes {dimension_semantics = [#tpu.dimension_semantics<parallel>], iteration_bounds = array<i64: 1>, scalar_prefetch = 0 : i64, scratch_operands = 0 : i64, tpu.core_type = #tpu.core_type<tc>, window_params = [{transform_indices = @transform_0, window_bounds = array<i64: 16, 1024>}, {pipeline_mode = #tpu.pipeline_mode<synchronous>, transform_indices = @transform_1, window_bounds = array<i64: 1024, 256>}, {pipeline_mode = #tpu.pipeline_mode<synchronous>, transform_indices = @transform_2, window_bounds = array<i64: 1, 256>}, {pipeline_mode = #tpu.pipeline_mode<synchronous>, transform_indices = @transform_3, window_bounds = array<i64: 256, 256>}, {pipeline_mode = #tpu.pipeline_mode<synchronous>, transform_indices = @transform_4, window_bounds = array<i64: 1, 256>}, {pipeline_mode = #tpu.pipeline_mode<synchronous>, transform_indices = @transform_5, window_bounds = array<i64: 256, 128>}, {pipeline_mode = #tpu.pipeline_mode<synchronous>, transform_indices = @transform_6, window_bounds = array<i64: 1, 128>}, {pipeline_mode = #tpu.pipeline_mode<synchronous>, transform_indices = @transform_7, window_bounds = array<i64: 128, 128>}, {pipeline_mode = #tpu.pipeline_mode<synchronous>, transform_indices = @transform_8, window_bounds = array<i64: 1, 128>}, {pipeline_mode = #tpu.pipeline_mode<synchronous>, transform_indices = @transform_9, window_bounds = array<i64: 128, 128>}, {pipeline_mode = #tpu.pipeline_mode<synchronous>, transform_indices = @transform_10, window_bounds = array<i64: 1, 128>}, {transform_indices = @transform_11, window_bounds = array<i64: 16, 128>}]} {
    %c0 = arith.constant 0 : index
    %c0_0 = arith.constant 0 : index
    %0 = vector.load %arg1[%c0, %c0_0] : memref<16x1024xbf16, #tpu.memory_space<vmem>>, vector<16x1024xbf16>
    %c0_1 = arith.constant 0 : index
    %c0_2 = arith.constant 0 : index
    %1 = vector.load %arg2[%c0_1, %c0_2] : memref<1024x256xbf16, #tpu.memory_space<vmem>>, vector<1024x256xbf16>
    %cst = arith.constant dense<0.000000e+00> : vector<16x256xf32>
    %2 = tpu.matmul %0, %1, %cst {dimension_numbers = #tpu.dot_dimension_numbers<[1], [0], [0], [1], [0, 0, 1, 1], [], []>} : vector<16x1024xbf16>, vector<1024x256xbf16>, vector<16x256xf32> -> vector<16x256xf32>
    %c0_3 = arith.constant 0 : index
    %c0_4 = arith.constant 0 : index
    %3 = vector.load %arg3[%c0_3, %c0_4] : memref<1x256xf32, #tpu.memory_space<vmem>>, vector<1x256xf32>
    %4 = vector.broadcast %3 : vector<1x256xf32> to vector<16x256xf32>
    %5 = arith.addf %2, %4 : vector<16x256xf32>
    %cst_5 = arith.constant 0.000000e+00 : f32
    %6 = vector.broadcast %cst_5 : f32 to vector<16x256xf32>
    %7 = arith.maximumf %5, %6 : vector<16x256xf32>
    %8 = arith.truncf %7 : vector<16x256xf32> to vector<16x256xbf16>
    %c0_6 = arith.constant 0 : index
    %c0_7 = arith.constant 0 : index
    %9 = vector.load %arg4[%c0_6, %c0_7] : memref<256x256xbf16, #tpu.memory_space<vmem>>, vector<256x256xbf16>
    %cst_8 = arith.constant dense<0.000000e+00> : vector<16x256xf32>
    %10 = tpu.matmul %8, %9, %cst_8 {dimension_numbers = #tpu.dot_dimension_numbers<[1], [0], [0], [1], [0, 0, 1, 1], [], []>} : vector<16x256xbf16>, vector<256x256xbf16>, vector<16x256xf32> -> vector<16x256xf32>
    %c0_9 = arith.constant 0 : index
    %c0_10 = arith.constant 0 : index
    %11 = vector.load %arg5[%c0_9, %c0_10] : memref<1x256xf32, #tpu.memory_space<vmem>>, vector<1x256xf32>
    %12 = vector.broadcast %11 : vector<1x256xf32> to vector<16x256xf32>
    %13 = arith.addf %10, %12 : vector<16x256xf32>
    %cst_11 = arith.constant 0.000000e+00 : f32
    %14 = vector.broadcast %cst_11 : f32 to vector<16x256xf32>
    %15 = arith.maximumf %13, %14 : vector<16x256xf32>
    %16 = arith.truncf %15 : vector<16x256xf32> to vector<16x256xbf16>
    %c0_12 = arith.constant 0 : index
    %c0_13 = arith.constant 0 : index
    %17 = vector.load %arg6[%c0_12, %c0_13] : memref<256x128xbf16, #tpu.memory_space<vmem>>, vector<256x128xbf16>
    %cst_14 = arith.constant dense<0.000000e+00> : vector<16x128xf32>
    %18 = tpu.matmul %16, %17, %cst_14 {dimension_numbers = #tpu.dot_dimension_numbers<[1], [0], [0], [1], [0, 0, 1, 1], [], []>} : vector<16x256xbf16>, vector<256x128xbf16>, vector<16x128xf32> -> vector<16x128xf32>
    %c0_15 = arith.constant 0 : index
    %c0_16 = arith.constant 0 : index
    %19 = vector.load %arg7[%c0_15, %c0_16] : memref<1x128xf32, #tpu.memory_space<vmem>>, vector<1x128xf32>
    %20 = vector.broadcast %19 : vector<1x128xf32> to vector<16x128xf32>
    %21 = arith.addf %18, %20 : vector<16x128xf32>
    %cst_17 = arith.constant 0.000000e+00 : f32
    %22 = vector.broadcast %cst_17 : f32 to vector<16x128xf32>
    %23 = arith.maximumf %21, %22 : vector<16x128xf32>
    %24 = arith.truncf %23 : vector<16x128xf32> to vector<16x128xbf16>
    %c0_18 = arith.constant 0 : index
    %c0_19 = arith.constant 0 : index
    %25 = vector.load %arg8[%c0_18, %c0_19] : memref<128x128xbf16, #tpu.memory_space<vmem>>, vector<128x128xbf16>
    %cst_20 = arith.constant dense<0.000000e+00> : vector<16x128xf32>
    %26 = tpu.matmul %24, %25, %cst_20 {dimension_numbers = #tpu.dot_dimension_numbers<[1], [0], [0], [1], [0, 0, 1, 1], [], []>} : vector<16x128xbf16>, vector<128x128xbf16>, vector<16x128xf32> -> vector<16x128xf32>
    %c0_21 = arith.constant 0 : index
    %c0_22 = arith.constant 0 : index
    %27 = vector.load %arg9[%c0_21, %c0_22] : memref<1x128xf32, #tpu.memory_space<vmem>>, vector<1x128xf32>
    %28 = vector.broadcast %27 : vector<1x128xf32> to vector<16x128xf32>
    %29 = arith.addf %26, %28 : vector<16x128xf32>
    %cst_23 = arith.constant 0.000000e+00 : f32
    %30 = vector.broadcast %cst_23 : f32 to vector<16x128xf32>
    %31 = arith.maximumf %29, %30 : vector<16x128xf32>
    %32 = arith.truncf %31 : vector<16x128xf32> to vector<16x128xbf16>
    %c0_24 = arith.constant 0 : index
    %c0_25 = arith.constant 0 : index
    %33 = vector.load %arg10[%c0_24, %c0_25] : memref<128x128xbf16, #tpu.memory_space<vmem>>, vector<128x128xbf16>
    %cst_26 = arith.constant dense<0.000000e+00> : vector<16x128xf32>
    %34 = tpu.matmul %32, %33, %cst_26 {dimension_numbers = #tpu.dot_dimension_numbers<[1], [0], [0], [1], [0, 0, 1, 1], [], []>} : vector<16x128xbf16>, vector<128x128xbf16>, vector<16x128xf32> -> vector<16x128xf32>
    %c0_27 = arith.constant 0 : index
    %c0_28 = arith.constant 0 : index
    %35 = vector.load %arg11[%c0_27, %c0_28] : memref<1x128xf32, #tpu.memory_space<vmem>>, vector<1x128xf32>
    %36 = vector.broadcast %35 : vector<1x128xf32> to vector<16x128xf32>
    %37 = arith.addf %34, %36 : vector<16x128xf32>
    %c0_29 = arith.constant 0 : index
    %c0_30 = arith.constant 0 : index
    %38 = vector.load %arg12[%c0_29, %c0_30] : memref<16x128xf32, #tpu.memory_space<vmem>>, vector<16x128xf32>
    tpu.vector_store %arg12[%c0_29, %c0_30], %37 {strides = array<i32>} : memref<16x128xf32, #tpu.memory_space<vmem>>, vector<16x128xf32>,
    return
  }
  func.func @transform_0(%arg0: i32) -> (i32, i32) {
    %c0_i32 = arith.constant 0 : i32
    %c0_i32_0 = arith.constant 0 : i32
    return %arg0, %c0_i32 : i32, i32
  }
  func.func @transform_1(%arg0: i32) -> (i32, i32) {
    %c0_i32 = arith.constant 0 : i32
    %c0_i32_0 = arith.constant 0 : i32
    %c0_i32_1 = arith.constant 0 : i32
    return %c0_i32, %c0_i32_0 : i32, i32
  }
  func.func @transform_2(%arg0: i32) -> (i32, i32) {
    %c0_i32 = arith.constant 0 : i32
    %c0_i32_0 = arith.constant 0 : i32
    %c0_i32_1 = arith.constant 0 : i32
    return %c0_i32, %c0_i32_0 : i32, i32
  }
  func.func @transform_3(%arg0: i32) -> (i32, i32) {
    %c0_i32 = arith.constant 0 : i32
    %c0_i32_0 = arith.constant 0 : i32
    %c0_i32_1 = arith.constant 0 : i32
    return %c0_i32, %c0_i32_0 : i32, i32
  }
  func.func @transform_4(%arg0: i32) -> (i32, i32) {
    %c0_i32 = arith.constant 0 : i32
    %c0_i32_0 = arith.constant 0 : i32
    %c0_i32_1 = arith.constant 0 : i32
    return %c0_i32, %c0_i32_0 : i32, i32
  }
  func.func @transform_5(%arg0: i32) -> (i32, i32) {
    %c0_i32 = arith.constant 0 : i32
    %c0_i32_0 = arith.constant 0 : i32
    %c0_i32_1 = arith.constant 0 : i32
    return %c0_i32, %c0_i32_0 : i32, i32
  }
  func.func @transform_6(%arg0: i32) -> (i32, i32) {
    %c0_i32 = arith.constant 0 : i32
    %c0_i32_0 = arith.constant 0 : i32
    %c0_i32_1 = arith.constant 0 : i32
    return %c0_i32, %c0_i32_0 : i32, i32
  }
  func.func @transform_7(%arg0: i32) -> (i32, i32) {
    %c0_i32 = arith.constant 0 : i32
    %c0_i32_0 = arith.constant 0 : i32
    %c0_i32_1 = arith.constant 0 : i32
    return %c0_i32, %c0_i32_0 : i32, i32
  }
  func.func @transform_8(%arg0: i32) -> (i32, i32) {
    %c0_i32 = arith.constant 0 : i32
    %c0_i32_0 = arith.constant 0 : i32
    %c0_i32_1 = arith.constant 0 : i32
    return %c0_i32, %c0_i32_0 : i32, i32
  }
  func.func @transform_9(%arg0: i32) -> (i32, i32) {
    %c0_i32 = arith.constant 0 : i32
    %c0_i32_0 = arith.constant 0 : i32
    %c0_i32_1 = arith.constant 0 : i32
    return %c0_i32, %c0_i32_0 : i32, i32
  }
  func.func @transform_10(%arg0: i32) -> (i32, i32) {
    %c0_i32 = arith.constant 0 : i32
    %c0_i32_0 = arith.constant 0 : i32
    %c0_i32_1 = arith.constant 0 : i32
    return %c0_i32, %c0_i32_0 : i32, i32
  }
  func.func @transform_11(%arg0: i32) -> (i32, i32) {
    %c0_i32 = arith.constant 0 : i32
    %c0_i32_0 = arith.constant 0 : i32
    return %arg0, %c0_i32 : i32, i32
  }
}

</mosaic_0001>

<llo_original>
// kernel: tpu_custom_call.1
$region0: #{tpu_custom_call.1}
  #allocation0 [shape = 'u32[]', space=smem, size = 0x4, offset = 0x4, fixed_abs, tag = 'smem constant byte address 0x4 - core index']
  #allocation1 [shape = 'u32[144,128]{1,0:T(1,128)}', space=vmem, size = 0x12000, scoped, tag = 'internal scratch']
  %s0 = inlined_call_operand.hbm [shape: bf16[16,1024], index: 0, kind: input, shape index: {}]
  %s1 = inlined_call_operand.hbm [shape: bf16[1024,256], index: 1, kind: input, shape index: {}]
  %s2 = inlined_call_operand.vmem [shape: f32[1,256], index: 2, kind: input, shape index: {}]
  %s3 = inlined_call_operand.hbm [shape: bf16[256,256], index: 3, kind: input, shape index: {}]
  %s4 = inlined_call_operand.vmem [shape: f32[1,256], index: 4, kind: input, shape index: {}]
  %s5 = inlined_call_operand.hbm [shape: bf16[256,128], index: 5, kind: input, shape index: {}]
  %s6 = inlined_call_operand.vmem [shape: f32[1,128], index: 6, kind: input, shape index: {}]
  %s7 = inlined_call_operand.hbm [shape: bf16[128,128], index: 7, kind: input, shape index: {}]
  %s8 = inlined_call_operand.vmem [shape: f32[1,128], index: 8, kind: input, shape index: {}]
  %s9 = inlined_call_operand.hbm [shape: bf16[128,128], index: 9, kind: input, shape index: {}]
  %s10 = inlined_call_operand.vmem [shape: f32[1,128], index: 10, kind: input, shape index: {}]
  %s11 = inlined_call_operand.hbm [shape: f32[16,128], index: 11, kind: output, shape index: {}]
  %s12 = sld [smem:[#allocation0]]
  $region78: #{tpu_custom_call.1} parent=0
    _
  %s14 = ssub.s32 1, %s12
  %s15 = scalar_select 0, %s14, %s12
  $region1: #{tpu_custom_call.1} parent=0
    #allocation2 [shape = 'u8[32768]{0}', space=vmem, size = 0x8000, scoped, tag = 'input window, operand 0, single buffered']
    #allocation3 [shape = 's32[1]{0}', space=sflag, size = 0x4, scoped, tag = 'scoped memory for tpu_custom_call.1']
    #allocation4 [shape = 's32[1]{0}', space=sflag, size = 0x4, scoped, tag = 'scoped memory for tpu_custom_call.1']
    #allocation5 [shape = 'u8[524288]{0}', space=vmem, size = 0x80000, scoped, tag = 'input window, operand 1, single buffered']
    #allocation6 [shape = 's32[1]{0}', space=sflag, size = 0x4, scoped, tag = 'scoped memory for tpu_custom_call.1']
    #allocation7 [shape = 'u8[131072]{0}', space=vmem, size = 0x20000, scoped, tag = 'input window, operand 3, single buffered']
    #allocation8 [shape = 'u8[65536]{0}', space=vmem, size = 0x10000, scoped, tag = 'input window, operand 5, single buffered']
    #allocation9 [shape = 's32[1]{0}', space=sflag, size = 0x4, scoped, tag = 'scoped memory for tpu_custom_call.1']
    #allocation10 [shape = 'u8[32768]{0}', space=vmem, size = 0x8000, scoped, tag = 'input window, operand 7, single buffered']
    #allocation11 [shape = 'u8[32768]{0}', space=vmem, size = 0x8000, scoped, tag = 'input window, operand 9, single buffered']
    #allocation12 [shape = 's32[1]{0}', space=sflag, size = 0x4, scoped, tag = 'scoped memory for tpu_custom_call.1']
    #allocation13 [shape = 'u8[8192]{0}', space=vmem, size = 0x2000, scoped, tag = 'output window, operand 0, single buffered']
    %16 = vsyncpa [#allocation3], 0
    %17 = vsyncpa [#allocation6], 0
    %18 = vsyncpa [#allocation9], 0
    %19 = vsyncpa [#allocation12], 0
    %20 = vsyncpa [#allocation4], 0
    // Predicated region
    $region2: #{tpu_custom_call.1} parent=1 // pred_check
      _
    $region3: #{tpu_custom_call.1} parent=1 // pred_check_branch
      %22 = sbr.rel (0) target = $region5
    $region4: #{tpu_custom_call.1} parent=1 // pred_region
      %s24 = ssub.s32 1024, 1024
      %25 = vsyncadd [#allocation3], %s24
      %s26 = sshll.u32 [#allocation2], 4
      %s27 = int_to_ptr.vmem [resolvable:$true] %s26
      %32 = dma.hbm_to_vmem [thread:$0]  %s0, 1024, %s27, [#allocation3], 512, 512, 32
    $region5: #{tpu_custom_call.1} parent=1 // pred_fallthru
      _
    // Predicated region
    $region6: #{tpu_custom_call.1} parent=1 // pred_check
      _
    $region7: #{tpu_custom_call.1} parent=1 // pred_check_branch
      %34 = sbr.rel (0) target = $region9
    $region8: #{tpu_custom_call.1} parent=1 // pred_region
      %s36 = ssub.s32 16384, 16384
      %37 = vsyncadd [#allocation6], %s36
      %s38 = sshll.u32 [#allocation5], 4
      %s39 = int_to_ptr.vmem [resolvable:$true] %s38
      %44 = dma.hbm_to_vmem [thread:$0]  %s1, 16384, %s39, [#allocation6], 128, 128, 8
    $region9: #{tpu_custom_call.1} parent=1 // pred_fallthru
      _
    // Predicated region
    $region10: #{tpu_custom_call.1} parent=1 // pred_check
      _
    $region11: #{tpu_custom_call.1} parent=1 // pred_check_branch
      %46 = sbr.rel (0) target = $region13
    $region12: #{tpu_custom_call.1} parent=1 // pred_region
      _
    $region13: #{tpu_custom_call.1} parent=1 // pred_fallthru
      _
    // Predicated region
    $region14: #{tpu_custom_call.1} parent=1 // pred_check
      _
    $region15: #{tpu_custom_call.1} parent=1 // pred_check_branch
      %48 = sbr.rel (0) target = $region17
    $region16: #{tpu_custom_call.1} parent=1 // pred_region
      %s50 = ssub.s32 4096, 4096
      %51 = vsyncadd [#allocation6], %s50
      %s52 = sshll.u32 [#allocation7], 4
      %s53 = int_to_ptr.vmem [resolvable:$true] %s52
      %58 = dma.hbm_to_vmem [thread:$0]  %s3, 4096, %s53, [#allocation6], 128, 128, 8
    $region17: #{tpu_custom_call.1} parent=1 // pred_fallthru
      _
    // Predicated region
    $region18: #{tpu_custom_call.1} parent=1 // pred_check
      _
    $region19: #{tpu_custom_call.1} parent=1 // pred_check_branch
      %60 = sbr.rel (0) target = $region21
    $region20: #{tpu_custom_call.1} parent=1 // pred_region
      _
    $region21: #{tpu_custom_call.1} parent=1 // pred_fallthru
      _
    // Predicated region
    $region22: #{tpu_custom_call.1} parent=1 // pred_check
      _
    $region23: #{tpu_custom_call.1} parent=1 // pred_check_branch
      %62 = sbr.rel (0) target = $region25
    $region24: #{tpu_custom_call.1} parent=1 // pred_region
      %s64 = ssub.s32 2048, 2048
      %65 = vsyncadd [#allocation9], %s64
      %s66 = sshll.u32 [#allocation8], 4
      %s67 = int_to_ptr.vmem [resolvable:$true] %s66
      %72 = dma.hbm_to_vmem [thread:$0]  %s5, 2048, %s67, [#allocation9], 64, 64, 4
    $region25: #{tpu_custom_call.1} parent=1 // pred_fallthru
      _
    // Predicated region
    $region26: #{tpu_custom_call.1} parent=1 // pred_check
      _
    $region27: #{tpu_custom_call.1} parent=1 // pred_check_branch
      %74 = sbr.rel (0) target = $region29
    $region28: #{tpu_custom_call.1} parent=1 // pred_region
      _
    $region29: #{tpu_custom_call.1} parent=1 // pred_fallthru
      _
    // Predicated region
    $region30: #{tpu_custom_call.1} parent=1 // pred_check
      _
    $region31: #{tpu_custom_call.1} parent=1 // pred_check_branch
      %76 = sbr.rel (0) target = $region33
    $region32: #{tpu_custom_call.1} parent=1 // pred_region
      %s78 = ssub.s32 1024, 1024
      %79 = vsyncadd [#allocation9], %s78
      %s80 = sshll.u32 [#allocation10], 4
      %s81 = int_to_ptr.vmem [resolvable:$true] %s80
      %86 = dma.hbm_to_vmem [thread:$0]  %s7, 1024, %s81, [#allocation9], 64, 64, 4
    $region33: #{tpu_custom_call.1} parent=1 // pred_fallthru
      _
    // Predicated region
    $region34: #{tpu_custom_call.1} parent=1 // pred_check
      _
    $region35: #{tpu_custom_call.1} parent=1 // pred_check_branch
      %88 = sbr.rel (0) target = $region37
    $region36: #{tpu_custom_call.1} parent=1 // pred_region
      _
    $region37: #{tpu_custom_call.1} parent=1 // pred_fallthru
      _
    // Predicated region
    $region38: #{tpu_custom_call.1} parent=1 // pred_check
      _
    $region39: #{tpu_custom_call.1} parent=1 // pred_check_branch
      %90 = sbr.rel (0) target = $region41
    $region40: #{tpu_custom_call.1} parent=1 // pred_region
      %s92 = ssub.s32 1024, 1024
      %93 = vsyncadd [#allocation12], %s92
      %s94 = sshll.u32 [#allocation11], 4
      %s95 = int_to_ptr.vmem [resolvable:$true] %s94
      %100 = dma.hbm_to_vmem [thread:$0]  %s9, 1024, %s95, [#allocation12], 64, 64, 4
    $region41: #{tpu_custom_call.1} parent=1 // pred_fallthru
      _
    // Predicated region
    $region42: #{tpu_custom_call.1} parent=1 // pred_check
      _
    $region43: #{tpu_custom_call.1} parent=1 // pred_check_branch
      %102 = sbr.rel (0) target = $region45
    $region44: #{tpu_custom_call.1} parent=1 // pred_region
      _
    $region45: #{tpu_custom_call.1} parent=1 // pred_fallthru
      _
    // Predicated region
    $region46: #{tpu_custom_call.1} parent=1 // pred_check
      _
    $region47: #{tpu_custom_call.1} parent=1 // pred_check_branch
      %104 = sbr.rel (0) target = $region49
    $region48: #{tpu_custom_call.1} parent=1 // pred_region
      %105 = dma.done [#allocation3], 1024
    $region49: #{tpu_custom_call.1} parent=1 // pred_fallthru
      _
    // Predicated region
    $region50: #{tpu_custom_call.1} parent=1 // pred_check
      _
    $region51: #{tpu_custom_call.1} parent=1 // pred_check_branch
      %107 = sbr.rel (0) target = $region53
    $region52: #{tpu_custom_call.1} parent=1 // pred_region
      %108 = dma.done [#allocation6], 16384
    $region53: #{tpu_custom_call.1} parent=1 // pred_fallthru
      _
    // Predicated region
    $region54: #{tpu_custom_call.1} parent=1 // pred_check
      _
    $region55: #{tpu_custom_call.1} parent=1 // pred_check_branch
      %110 = sbr.rel (0) target = $region57
    $region56: #{tpu_custom_call.1} parent=1 // pred_region
      %111 = dma.done [#allocation6], 4096
    $region57: #{tpu_custom_call.1} parent=1 // pred_fallthru
      _
    // Predicated region
    $region58: #{tpu_custom_call.1} parent=1 // pred_check
      _
    $region59: #{tpu_custom_call.1} parent=1 // pred_check_branch
      %113 = sbr.rel (0) target = $region61
    $region60: #{tpu_custom_call.1} parent=1 // pred_region
      %114 = dma.done [#allocation9], 2048
    $region61: #{tpu_custom_call.1} parent=1 // pred_fallthru
      _
    // Predicated region
    $region62: #{tpu_custom_call.1} parent=1 // pred_check
      _
    $region63: #{tpu_custom_call.1} parent=1 // pred_check_branch
      %116 = sbr.rel (0) target = $region65
    $region64: #{tpu_custom_call.1} parent=1 // pred_region
      %117 = dma.done [#allocation9], 1024
    $region65: #{tpu_custom_call.1} parent=1 // pred_fallthru
      _
    // Predicated region
    $region66: #{tpu_custom_call.1} parent=1 // pred_check
      _
    $region67: #{tpu_custom_call.1} parent=1 // pred_check_branch
      %119 = sbr.rel (0) target = $region69
    $region68: #{tpu_custom_call.1} parent=1 // pred_region
      %120 = dma.done [#allocation12], 1024
    $region69: #{tpu_custom_call.1} parent=1 // pred_fallthru
      _
    %v122 = vld [vmem:[#allocation2] sm:$0xff]
    %v123 = vld [vmem:[#allocation2 + $0x8] sm:$0xff]
    %v124 = vld [vmem:[#allocation2 + $0x10] sm:$0xff]
    %v125 = vld [vmem:[#allocation2 + $0x18] sm:$0xff]
    %v126 = vld [vmem:[#allocation2 + $0x20] sm:$0xff]
    %v127 = vld [vmem:[#allocation2 + $0x28] sm:$0xff]
    %v128 = vld [vmem:[#allocation2 + $0x30] sm:$0xff]
    %v129 = vld [vmem:[#allocation2 + $0x38] sm:$0xff]
    %v130 = vld [vmem:[#allocation5] sm:$0xff]
    %v131 = vld [vmem:[#allocation5 + $0x8] sm:$0xff]
    %v132 = vld [vmem:[#allocation5 + $0x10] sm:$0xff]
    %v133 = vld [vmem:[#allocation5 + $0x18] sm:$0xff]
    %v134 = vld [vmem:[#allocation5 + $0x20] sm:$0xff]
    %v135 = vld [vmem:[#allocation5 + $0x28] sm:$0xff]
    %v136 = vld [vmem:[#allocation5 + $0x30] sm:$0xff]
    %v137 = vld [vmem:[#allocation5 + $0x38] sm:$0xff]
    %v138 = vld [vmem:[#allocation5 + $0x40] sm:$0xff]
    %v139 = vld [vmem:[#allocation5 + $0x48] sm:$0xff]
    %v140 = vld [vmem:[#allocation5 + $0x50] sm:$0xff]
    %v141 = vld [vmem:[#allocation5 + $0x58] sm:$0xff]
    %v142 = vld [vmem:[#allocation5 + $0x60] sm:$0xff]
    %v143 = vld [vmem:[#allocation5 + $0x68] sm:$0xff]
    %v144 = vld [vmem:[#allocation5 + $0x70] sm:$0xff]
    %v145 = vld [vmem:[#allocation5 + $0x78] sm:$0xff]
    %v146 = vld [vmem:[#allocation5 + $0x80] sm:$0xff]
    %v147 = vld [vmem:[#allocation5 + $0x88] sm:$0xff]
    %v148 = vld [vmem:[#allocation5 + $0x90] sm:$0xff]
    %v149 = vld [vmem:[#allocation5 + $0x98] sm:$0xff]
    %v150 = vld [vmem:[#allocation5 + $0xa0] sm:$0xff]
    %v151 = vld [vmem:[#allocation5 + $0xa8] sm:$0xff]
    %v152 = vld [vmem:[#allocation5 + $0xb0] sm:$0xff]
    %v153 = vld [vmem:[#allocation5 + $0xb8] sm:$0xff]
    %v154 = vld [vmem:[#allocation5 + $0xc0] sm:$0xff]
    %v155 = vld [vmem:[#allocation5 + $0xc8] sm:$0xff]
    %v156 = vld [vmem:[#allocation5 + $0xd0] sm:$0xff]
    %v157 = vld [vmem:[#allocation5 + $0xd8] sm:$0xff]
    %v158 = vld [vmem:[#allocation5 + $0xe0] sm:$0xff]
    %v159 = vld [vmem:[#allocation5 + $0xe8] sm:$0xff]
    %v160 = vld [vmem:[#allocation5 + $0xf0] sm:$0xff]
    %v161 = vld [vmem:[#allocation5 + $0xf8] sm:$0xff]
    %v162 = vld [vmem:[#allocation5 + $0x100] sm:$0xff]
    %v163 = vld [vmem:[#allocation5 + $0x108] sm:$0xff]
    %v164 = vld [vmem:[#allocation5 + $0x110] sm:$0xff]
    %v165 = vld [vmem:[#allocation5 + $0x118] sm:$0xff]
    %v166 = vld [vmem:[#allocation5 + $0x120] sm:$0xff]
    %v167 = vld [vmem:[#allocation5 + $0x128] sm:$0xff]
    %v168 = vld [vmem:[#allocation5 + $0x130] sm:$0xff]
    %v169 = vld [vmem:[#allocation5 + $0x138] sm:$0xff]
    %v170 = vld [vmem:[#allocation5 + $0x140] sm:$0xff]
    %v171 = vld [vmem:[#allocation5 + $0x148] sm:$0xff]
    %v172 = vld [vmem:[#allocation5 + $0x150] sm:$0xff]
    %v173 = vld [vmem:[#allocation5 + $0x158] sm:$0xff]
    %v174 = vld [vmem:[#allocation5 + $0x160] sm:$0xff]
    %v175 = vld [vmem:[#allocation5 + $0x168] sm:$0xff]
    %v176 = vld [vmem:[#allocation5 + $0x170] sm:$0xff]
    %v177 = vld [vmem:[#allocation5 + $0x178] sm:$0xff]
    %v178 = vld [vmem:[#allocation5 + $0x180] sm:$0xff]
    %v179 = vld [vmem:[#allocation5 + $0x188] sm:$0xff]
    %v180 = vld [vmem:[#allocation5 + $0x190] sm:$0xff]
    %v181 = vld [vmem:[#allocation5 + $0x198] sm:$0xff]
    %v182 = vld [vmem:[#allocation5 + $0x1a0] sm:$0xff]
    %v183 = vld [vmem:[#allocation5 + $0x1a8] sm:$0xff]
    %v184 = vld [vmem:[#allocation5 + $0x1b0] sm:$0xff]
    %v185 = vld [vmem:[#allocation5 + $0x1b8] sm:$0xff]
    %v186 = vld [vmem:[#allocation5 + $0x1c0] sm:$0xff]
    %v187 = vld [vmem:[#allocation5 + $0x1c8] sm:$0xff]
    %v188 = vld [vmem:[#allocation5 + $0x1d0] sm:$0xff]
    %v189 = vld [vmem:[#allocation5 + $0x1d8] sm:$0xff]
    %v190 = vld [vmem:[#allocation5 + $0x1e0] sm:$0xff]
    %v191 = vld [vmem:[#allocation5 + $0x1e8] sm:$0xff]
    %v192 = vld [vmem:[#allocation5 + $0x1f0] sm:$0xff]
    %v193 = vld [vmem:[#allocation5 + $0x1f8] sm:$0xff]
    %v194 = vld [vmem:[#allocation5 + $0x200] sm:$0xff]
    %v195 = vld [vmem:[#allocation5 + $0x208] sm:$0xff]
    %v196 = vld [vmem:[#allocation5 + $0x210] sm:$0xff]
    %v197 = vld [vmem:[#allocation5 + $0x218] sm:$0xff]
    %v198 = vld [vmem:[#allocation5 + $0x220] sm:$0xff]
    %v199 = vld [vmem:[#allocation5 + $0x228] sm:$0xff]
    %v200 = vld [vmem:[#allocation5 + $0x230] sm:$0xff]
    %v201 = vld [vmem:[#allocation5 + $0x238] sm:$0xff]
    %v202 = vld [vmem:[#allocation5 + $0x240] sm:$0xff]
    %v203 = vld [vmem:[#allocation5 + $0x248] sm:$0xff]
    %v204 = vld [vmem:[#allocation5 + $0x250] sm:$0xff]
    %v205 = vld [vmem:[#allocation5 + $0x258] sm:$0xff]
    %v206 = vld [vmem:[#allocation5 + $0x260] sm:$0xff]
    %v207 = vld [vmem:[#allocation5 + $0x268] sm:$0xff]
    %v208 = vld [vmem:[#allocation5 + $0x270] sm:$0xff]
    %v209 = vld [vmem:[#allocation5 + $0x278] sm:$0xff]
    %v210 = vld [vmem:[#allocation5 + $0x280] sm:$0xff]
    %v211 = vld [vmem:[#allocation5 + $0x288] sm:$0xff]
    %v212 = vld [vmem:[#allocation5 + $0x290] sm:$0xff]
    %v213 = vld [vmem:[#allocation5 + $0x298] sm:$0xff]
    %v214 = vld [vmem:[#allocation5 + $0x2a0] sm:$0xff]
    %v215 = vld [vmem:[#allocation5 + $0x2a8] sm:$0xff]
    %v216 = vld [vmem:[#allocation5 + $0x2b0] sm:$0xff]
    %v217 = vld [vmem:[#allocation5 + $0x2b8] sm:$0xff]
    %v218 = vld [vmem:[#allocation5 + $0x2c0] sm:$0xff]
    %v219 = vld [vmem:[#allocation5 + $0x2c8] sm:$0xff]
    %v220 = vld [vmem:[#allocation5 + $0x2d0] sm:$0xff]
    %v221 = vld [vmem:[#allocation5 + $0x2d8] sm:$0xff]
    %v222 = vld [vmem:[#allocation5 + $0x2e0] sm:$0xff]
    %v223 = vld [vmem:[#allocation5 + $0x2e8] sm:$0xff]
    %v224 = vld [vmem:[#allocation5 + $0x2f0] sm:$0xff]
    %v225 = vld [vmem:[#allocation5 + $0x2f8] sm:$0xff]
    %v226 = vld [vmem:[#allocation5 + $0x300] sm:$0xff]
    %v227 = vld [vmem:[#allocation5 + $0x308] sm:$0xff]
    %v228 = vld [vmem:[#allocation5 + $0x310] sm:$0xff]
    %v229 = vld [vmem:[#allocation5 + $0x318] sm:$0xff]
    %v230 = vld [vmem:[#allocation5 + $0x320] sm:$0xff]
    %v231 = vld [vmem:[#allocation5 + $0x328] sm:$0xff]
    %v232 = vld [vmem:[#allocation5 + $0x330] sm:$0xff]
    %v233 = vld [vmem:[#allocation5 + $0x338] sm:$0xff]
    %v234 = vld [vmem:[#allocation5 + $0x340] sm:$0xff]
    %v235 = vld [vmem:[#allocation5 + $0x348] sm:$0xff]
    %v236 = vld [vmem:[#allocation5 + $0x350] sm:$0xff]
    %v237 = vld [vmem:[#allocation5 + $0x358] sm:$0xff]
    %v238 = vld [vmem:[#allocation5 + $0x360] sm:$0xff]
    %v239 = vld [vmem:[#allocation5 + $0x368] sm:$0xff]
    %v240 = vld [vmem:[#allocation5 + $0x370] sm:$0xff]
    %v241 = vld [vmem:[#allocation5 + $0x378] sm:$0xff]
    %v242 = vld [vmem:[#allocation5 + $0x380] sm:$0xff]
    %v243 = vld [vmem:[#allocation5 + $0x388] sm:$0xff]
    %v244 = vld [vmem:[#allocation5 + $0x390] sm:$0xff]
    %v245 = vld [vmem:[#allocation5 + $0x398] sm:$0xff]
    %v246 = vld [vmem:[#allocation5 + $0x3a0] sm:$0xff]
    %v247 = vld [vmem:[#allocation5 + $0x3a8] sm:$0xff]
    %v248 = vld [vmem:[#allocation5 + $0x3b0] sm:$0xff]
    %v249 = vld [vmem:[#allocation5 + $0x3b8] sm:$0xff]
    %v250 = vld [vmem:[#allocation5 + $0x3c0] sm:$0xff]
    %v251 = vld [vmem:[#allocation5 + $0x3c8] sm:$0xff]
    %v252 = vld [vmem:[#allocation5 + $0x3d0] sm:$0xff]
    %v253 = vld [vmem:[#allocation5 + $0x3d8] sm:$0xff]
    %v254 = vld [vmem:[#allocation5 + $0x3e0] sm:$0xff]
    %v255 = vld [vmem:[#allocation5 + $0x3e8] sm:$0xff]
    %v256 = vld [vmem:[#allocation5 + $0x3f0] sm:$0xff]
    %v257 = vld [vmem:[#allocation5 + $0x3f8] sm:$0xff]
    %v258 = vld [vmem:[%s2] sm:$0x3]
    %v260 = vlaneseq
    %v261 = vshrl.u32 %v260, 7
    %v262 = vsub.s32 0, %v261
    %v263 = vrot.slane %v258, %v262
    %v264 = vlaneseq
    %v265 = vshrl.u32 %v264, 7
    %v266 = vsub.s32 1, %v265
    %v267 = vrot.slane %v258, %v266
    %v278 = vunpack.c.l.b16 %v122
    %v279 = vunpack.c.h.b16 %v122
    %v280 = vunpack.c.l.b16 %v123
    %v281 = vunpack.c.h.b16 %v123
    %v282 = vunpack.c.l.b16 %v124
    %v283 = vunpack.c.h.b16 %v124
    %v284 = vunpack.c.l.b16 %v125
    %v285 = vunpack.c.h.b16 %v125
    %v286 = vunpack.c.l.b16 %v126
    %v287 = vunpack.c.h.b16 %v126
    %v288 = vunpack.c.l.b16 %v127
    %v289 = vunpack.c.h.b16 %v127
    %v290 = vunpack.c.l.b16 %v128
    %v291 = vunpack.c.h.b16 %v128
    %v292 = vunpack.c.l.b16 %v129
    %v293 = vunpack.c.h.b16 %v129
    %v294 = vpack.c.b16 %v286, %v278
    %v295 = vpack.c.b16 %v287, %v279
    %v296 = vpack.c.b16 %v288, %v280
    %v297 = vpack.c.b16 %v289, %v281
    %v298 = vpack.c.b16 %v290, %v282
    %v299 = vpack.c.b16 %v291, %v283
    %v300 = vpack.c.b16 %v292, %v284
    %v301 = vpack.c.b16 %v293, %v285
    %v438 = vunpack.c.l.b16 %v130
    %v439 = vunpack.c.h.b16 %v130
    %v440 = vunpack.c.l.b16 %v131
    %v441 = vunpack.c.h.b16 %v131
    %v442 = vunpack.c.l.b16 %v132
    %v443 = vunpack.c.h.b16 %v132
    %v444 = vunpack.c.l.b16 %v133
    %v445 = vunpack.c.h.b16 %v133
    %v446 = vunpack.c.l.b16 %v134
    %v447 = vunpack.c.h.b16 %v134
    %v448 = vunpack.c.l.b16 %v135
    %v449 = vunpack.c.h.b16 %v135
    %v450 = vunpack.c.l.b16 %v136
    %v451 = vunpack.c.h.b16 %v136
    %v452 = vunpack.c.l.b16 %v137
    %v453 = vunpack.c.h.b16 %v137
    %v454 = vunpack.c.l.b16 %v138
    %v455 = vunpack.c.h.b16 %v138
    %v456 = vunpack.c.l.b16 %v139
    %v457 = vunpack.c.h.b16 %v139
    %v458 = vunpack.c.l.b16 %v140
    %v459 = vunpack.c.h.b16 %v140
    %v460 = vunpack.c.l.b16 %v141
    %v461 = vunpack.c.h.b16 %v141
    %v462 = vunpack.c.l.b16 %v142
    %v463 = vunpack.c.h.b16 %v142
    %v464 = vunpack.c.l.b16 %v143
    %v465 = vunpack.c.h.b16 %v143
    %v466 = vunpack.c.l.b16 %v144
    %v467 = vunpack.c.h.b16 %v144
    %v468 = vunpack.c.l.b16 %v145
    %v469 = vunpack.c.h.b16 %v145
    %v470 = vunpack.c.l.b16 %v146
    %v471 = vunpack.c.h.b16 %v146
    %v472 = vunpack.c.l.b16 %v147
    %v473 = vunpack.c.h.b16 %v147
    %v474 = vunpack.c.l.b16 %v148
    %v475 = vunpack.c.h.b16 %v148
    %v476 = vunpack.c.l.b16 %v149
    %v477 = vunpack.c.h.b16 %v149
    %v478 = vunpack.c.l.b16 %v150
    %v479 = vunpack.c.h.b16 %v150
    %v480 = vunpack.c.l.b16 %v151
    %v481 = vunpack.c.h.b16 %v151
    %v482 = vunpack.c.l.b16 %v152
    %v483 = vunpack.c.h.b16 %v152
    %v484 = vunpack.c.l.b16 %v153
    %v485 = vunpack.c.h.b16 %v153
    %v486 = vunpack.c.l.b16 %v154
    %v487 = vunpack.c.h.b16 %v154
    %v488 = vunpack.c.l.b16 %v155
    %v489 = vunpack.c.h.b16 %v155
    %v490 = vunpack.c.l.b16 %v156
    %v491 = vunpack.c.h.b16 %v156
    %v492 = vunpack.c.l.b16 %v157
    %v493 = vunpack.c.h.b16 %v157
    %v494 = vunpack.c.l.b16 %v158
    %v495 = vunpack.c.h.b16 %v158
    %v496 = vunpack.c.l.b16 %v159
    %v497 = vunpack.c.h.b16 %v159
    %v498 = vunpack.c.l.b16 %v160
    %v499 = vunpack.c.h.b16 %v160
    %v500 = vunpack.c.l.b16 %v161
    %v501 = vunpack.c.h.b16 %v161
    %v502 = vunpack.c.l.b16 %v162
    %v503 = vunpack.c.h.b16 %v162
    %v504 = vunpack.c.l.b16 %v163
    %v505 = vunpack.c.h.b16 %v163
    %v506 = vunpack.c.l.b16 %v164
    %v507 = vunpack.c.h.b16 %v164
    %v508 = vunpack.c.l.b16 %v165
    %v509 = vunpack.c.h.b16 %v165
    %v510 = vunpack.c.l.b16 %v166
    %v511 = vunpack.c.h.b16 %v166
    %v512 = vunpack.c.l.b16 %v167
    %v513 = vunpack.c.h.b16 %v167
    %v514 = vunpack.c.l.b16 %v168
    %v515 = vunpack.c.h.b16 %v168
    %v516 = vunpack.c.l.b16 %v169
    %v517 = vunpack.c.h.b16 %v169
    %v518 = vunpack.c.l.b16 %v170
    %v519 = vunpack.c.h.b16 %v170
    %v520 = vunpack.c.l.b16 %v171
    %v521 = vunpack.c.h.b16 %v171
    %v522 = vunpack.c.l.b16 %v172
    %v523 = vunpack.c.h.b16 %v172
    %v524 = vunpack.c.l.b16 %v173
    %v525 = vunpack.c.h.b16 %v173
    %v526 = vunpack.c.l.b16 %v174
    %v527 = vunpack.c.h.b16 %v174
    %v528 = vunpack.c.l.b16 %v175
    %v529 = vunpack.c.h.b16 %v175
    %v530 = vunpack.c.l.b16 %v176
    %v531 = vunpack.c.h.b16 %v176
    %v532 = vunpack.c.l.b16 %v177
    %v533 = vunpack.c.h.b16 %v177
    %v534 = vunpack.c.l.b16 %v178
    %v535 = vunpack.c.h.b16 %v178
    %v536 = vunpack.c.l.b16 %v179
    %v537 = vunpack.c.h.b16 %v179
    %v538 = vunpack.c.l.b16 %v180
    %v539 = vunpack.c.h.b16 %v180
    %v540 = vunpack.c.l.b16 %v181
    %v541 = vunpack.c.h.b16 %v181
    %v542 = vunpack.c.l.b16 %v182
    %v543 = vunpack.c.h.b16 %v182
    %v544 = vunpack.c.l.b16 %v183
    %v545 = vunpack.c.h.b16 %v183
    %v546 = vunpack.c.l.b16 %v184
    %v547 = vunpack.c.h.b16 %v184
    %v548 = vunpack.c.l.b16 %v185
    %v549 = vunpack.c.h.b16 %v185
    %v550 = vunpack.c.l.b16 %v186
    %v551 = vunpack.c.h.b16 %v186
    %v552 = vunpack.c.l.b16 %v187
    %v553 = vunpack.c.h.b16 %v187
    %v554 = vunpack.c.l.b16 %v188
    %v555 = vunpack.c.h.b16 %v188
    %v556 = vunpack.c.l.b16 %v189
    %v557 = vunpack.c.h.b16 %v189
    %v558 = vunpack.c.l.b16 %v190
    %v559 = vunpack.c.h.b16 %v190
    %v560 = vunpack.c.l.b16 %v191
    %v561 = vunpack.c.h.b16 %v191
    %v562 = vunpack.c.l.b16 %v192
    %v563 = vunpack.c.h.b16 %v192
    %v564 = vunpack.c.l.b16 %v193
    %v565 = vunpack.c.h.b16 %v193
    %v566 = vunpack.c.l.b16 %v194
    %v567 = vunpack.c.h.b16 %v194
    %v568 = vunpack.c.l.b16 %v195
    %v569 = vunpack.c.h.b16 %v195
    %v570 = vunpack.c.l.b16 %v196
    %v571 = vunpack.c.h.b16 %v196
    %v572 = vunpack.c.l.b16 %v197
    %v573 = vunpack.c.h.b16 %v197
    %v574 = vunpack.c.l.b16 %v198
    %v575 = vunpack.c.h.b16 %v198
    %v576 = vunpack.c.l.b16 %v199
    %v577 = vunpack.c.h.b16 %v199
    %v578 = vunpack.c.l.b16 %v200
    %v579 = vunpack.c.h.b16 %v200
    %v580 = vunpack.c.l.b16 %v201
    %v581 = vunpack.c.h.b16 %v201
    %v582 = vunpack.c.l.b16 %v202
    %v583 = vunpack.c.h.b16 %v202
    %v584 = vunpack.c.l.b16 %v203
    %v585 = vunpack.c.h.b16 %v203
    %v586 = vunpack.c.l.b16 %v204
    %v587 = vunpack.c.h.b16 %v204
    %v588 = vunpack.c.l.b16 %v205
    %v589 = vunpack.c.h.b16 %v205
    %v590 = vunpack.c.l.b16 %v206
    %v591 = vunpack.c.h.b16 %v206
    %v592 = vunpack.c.l.b16 %v207
    %v593 = vunpack.c.h.b16 %v207
    %v594 = vunpack.c.l.b16 %v208
    %v595 = vunpack.c.h.b16 %v208
    %v596 = vunpack.c.l.b16 %v209
    %v597 = vunpack.c.h.b16 %v209
    %v598 = vunpack.c.l.b16 %v210
    %v599 = vunpack.c.h.b16 %v210
    %v600 = vunpack.c.l.b16 %v211
    %v601 = vunpack.c.h.b16 %v211
    %v602 = vunpack.c.l.b16 %v212
    %v603 = vunpack.c.h.b16 %v212
    %v604 = vunpack.c.l.b16 %v213
    %v605 = vunpack.c.h.b16 %v213
    %v606 = vunpack.c.l.b16 %v214
    %v607 = vunpack.c.h.b16 %v214
    %v608 = vunpack.c.l.b16 %v215
    %v609 = vunpack.c.h.b16 %v215
    %v610 = vunpack.c.l.b16 %v216
    %v611 = vunpack.c.h.b16 %v216
    %v612 = vunpack.c.l.b16 %v217
    %v613 = vunpack.c.h.b16 %v217
    %v614 = vunpack.c.l.b16 %v218
    %v615 = vunpack.c.h.b16 %v218
    %v616 = vunpack.c.l.b16 %v219
    %v617 = vunpack.c.h.b16 %v219
    %v618 = vunpack.c.l.b16 %v220
    %v619 = vunpack.c.h.b16 %v220
    %v620 = vunpack.c.l.b16 %v221
    %v621 = vunpack.c.h.b16 %v221
    %v622 = vunpack.c.l.b16 %v222
    %v623 = vunpack.c.h.b16 %v222
    %v624 = vunpack.c.l.b16 %v223
    %v625 = vunpack.c.h.b16 %v223
    %v626 = vunpack.c.l.b16 %v224
    %v627 = vunpack.c.h.b16 %v224
    %v628 = vunpack.c.l.b16 %v225
    %v629 = vunpack.c.h.b16 %v225
    %v630 = vunpack.c.l.b16 %v226
    %v631 = vunpack.c.h.b16 %v226
    %v632 = vunpack.c.l.b16 %v227
    %v633 = vunpack.c.h.b16 %v227
    %v634 = vunpack.c.l.b16 %v228
    %v635 = vunpack.c.h.b16 %v228
    %v636 = vunpack.c.l.b16 %v229
    %v637 = vunpack.c.h.b16 %v229
    %v638 = vunpack.c.l.b16 %v230
    %v639 = vunpack.c.h.b16 %v230
    %v640 = vunpack.c.l.b16 %v231
    %v641 = vunpack.c.h.b16 %v231
    %v642 = vunpack.c.l.b16 %v232
    %v643 = vunpack.c.h.b16 %v232
    %v644 = vunpack.c.l.b16 %v233
    %v645 = vunpack.c.h.b16 %v233
    %v646 = vunpack.c.l.b16 %v234
    %v647 = vunpack.c.h.b16 %v234
    %v648 = vunpack.c.l.b16 %v235
    %v649 = vunpack.c.h.b16 %v235
    %v650 = vunpack.c.l.b16 %v236
    %v651 = vunpack.c.h.b16 %v236
    %v652 = vunpack.c.l.b16 %v237
    %v653 = vunpack.c.h.b16 %v237
    %v654 = vunpack.c.l.b16 %v238
    %v655 = vunpack.c.h.b16 %v238
    %v656 = vunpack.c.l.b16 %v239
    %v657 = vunpack.c.h.b16 %v239
    %v658 = vunpack.c.l.b16 %v240
    %v659 = vunpack.c.h.b16 %v240
    %v660 = vunpack.c.l.b16 %v241
    %v661 = vunpack.c.h.b16 %v241
    %v662 = vunpack.c.l.b16 %v242
    %v663 = vunpack.c.h.b16 %v242
    %v664 = vunpack.c.l.b16 %v243
    %v665 = vunpack.c.h.b16 %v243
    %v666 = vunpack.c.l.b16 %v244
    %v667 = vunpack.c.h.b16 %v244
    %v668 = vunpack.c.l.b16 %v245
    %v669 = vunpack.c.h.b16 %v245
    %v670 = vunpack.c.l.b16 %v246
    %v671 = vunpack.c.h.b16 %v246
    %v672 = vunpack.c.l.b16 %v247
    %v673 = vunpack.c.h.b16 %v247
    %v674 = vunpack.c.l.b16 %v248
    %v675 = vunpack.c.h.b16 %v248
    %v676 = vunpack.c.l.b16 %v249
    %v677 = vunpack.c.h.b16 %v249
    %v678 = vunpack.c.l.b16 %v250
    %v679 = vunpack.c.h.b16 %v250
    %v680 = vunpack.c.l.b16 %v251
    %v681 = vunpack.c.h.b16 %v251
    %v682 = vunpack.c.l.b16 %v252
    %v683 = vunpack.c.h.b16 %v252
    %v684 = vunpack.c.l.b16 %v253
    %v685 = vunpack.c.h.b16 %v253
    %v686 = vunpack.c.l.b16 %v254
    %v687 = vunpack.c.h.b16 %v254
    %v688 = vunpack.c.l.b16 %v255
    %v689 = vunpack.c.h.b16 %v255
    %v690 = vunpack.c.l.b16 %v256
    %v691 = vunpack.c.h.b16 %v256
    %v692 = vunpack.c.l.b16 %v257
    %v693 = vunpack.c.h.b16 %v257
    %v694 = vpack.c.b16 %v440, %v438
    %v695 = vpack.c.b16 %v441, %v439
    %v696 = vpack.c.b16 %v444, %v442
    %v697 = vpack.c.b16 %v445, %v443
    %v698 = vpack.c.b16 %v448, %v446
    %v699 = vpack.c.b16 %v449, %v447
    %v700 = vpack.c.b16 %v452, %v450
    %v701 = vpack.c.b16 %v453, %v451
    %v702 = vpack.c.b16 %v456, %v454
    %v703 = vpack.c.b16 %v457, %v455
    %v704 = vpack.c.b16 %v460, %v458
    %v705 = vpack.c.b16 %v461, %v459
    %v706 = vpack.c.b16 %v464, %v462
    %v707 = vpack.c.b16 %v465, %v463
    %v708 = vpack.c.b16 %v468, %v466
    %v709 = vpack.c.b16 %v469, %v467
    %v710 = vpack.c.b16 %v472, %v470
    %v711 = vpack.c.b16 %v473, %v471
    %v712 = vpack.c.b16 %v476, %v474
    %v713 = vpack.c.b16 %v477, %v475
    %v714 = vpack.c.b16 %v480, %v478
    %v715 = vpack.c.b16 %v481, %v479
    %v716 = vpack.c.b16 %v484, %v482
    %v717 = vpack.c.b16 %v485, %v483
    %v718 = vpack.c.b16 %v488, %v486
    %v719 = vpack.c.b16 %v489, %v487
    %v720 = vpack.c.b16 %v492, %v490
    %v721 = vpack.c.b16 %v493, %v491
    %v722 = vpack.c.b16 %v496, %v494
    %v723 = vpack.c.b16 %v497, %v495
    %v724 = vpack.c.b16 %v500, %v498
    %v725 = vpack.c.b16 %v501, %v499
    %v726 = vpack.c.b16 %v504, %v502
    %v727 = vpack.c.b16 %v505, %v503
    %v728 = vpack.c.b16 %v508, %v506
    %v729 = vpack.c.b16 %v509, %v507
    %v730 = vpack.c.b16 %v512, %v510
    %v731 = vpack.c.b16 %v513, %v511
    %v732 = vpack.c.b16 %v516, %v514
    %v733 = vpack.c.b16 %v517, %v515
    %v734 = vpack.c.b16 %v520, %v518
    %v735 = vpack.c.b16 %v521, %v519
    %v736 = vpack.c.b16 %v524, %v522
    %v737 = vpack.c.b16 %v525, %v523
    %v738 = vpack.c.b16 %v528, %v526
    %v739 = vpack.c.b16 %v529, %v527
    %v740 = vpack.c.b16 %v532, %v530
    %v741 = vpack.c.b16 %v533, %v531
    %v742 = vpack.c.b16 %v536, %v534
    %v743 = vpack.c.b16 %v537, %v535
    %v744 = vpack.c.b16 %v540, %v538
    %v745 = vpack.c.b16 %v541, %v539
    %v746 = vpack.c.b16 %v544, %v542
    %v747 = vpack.c.b16 %v545, %v543
    %v748 = vpack.c.b16 %v548, %v546
    %v749 = vpack.c.b16 %v549, %v547
    %v750 = vpack.c.b16 %v552, %v550
    %v751 = vpack.c.b16 %v553, %v551
    %v752 = vpack.c.b16 %v556, %v554
    %v753 = vpack.c.b16 %v557, %v555
    %v754 = vpack.c.b16 %v560, %v558
    %v755 = vpack.c.b16 %v561, %v559
    %v756 = vpack.c.b16 %v564, %v562
    %v757 = vpack.c.b16 %v565, %v563
    %v758 = vpack.c.b16 %v568, %v566
    %v759 = vpack.c.b16 %v569, %v567
    %v760 = vpack.c.b16 %v572, %v570
    %v761 = vpack.c.b16 %v573, %v571
    %v762 = vpack.c.b16 %v576, %v574
    %v763 = vpack.c.b16 %v577, %v575
    %v764 = vpack.c.b16 %v580, %v578
    %v765 = vpack.c.b16 %v581, %v579
    %v766 = vpack.c.b16 %v584, %v582
    %v767 = vpack.c.b16 %v585, %v583
    %v768 = vpack.c.b16 %v588, %v586
    %v769 = vpack.c.b16 %v589, %v587
    %v770 = vpack.c.b16 %v592, %v590
    %v771 = vpack.c.b16 %v593, %v591
    %v772 = vpack.c.b16 %v596, %v594
    %v773 = vpack.c.b16 %v597, %v595
    %v774 = vpack.c.b16 %v600, %v598
    %v775 = vpack.c.b16 %v601, %v599
    %v776 = vpack.c.b16 %v604, %v602
    %v777 = vpack.c.b16 %v605, %v603
    %v778 = vpack.c.b16 %v608, %v606
    %v779 = vpack.c.b16 %v609, %v607
    %v780 = vpack.c.b16 %v612, %v610
    %v781 = vpack.c.b16 %v613, %v611
    %v782 = vpack.c.b16 %v616, %v614
    %v783 = vpack.c.b16 %v617, %v615
    %v784 = vpack.c.b16 %v620, %v618
    %v785 = vpack.c.b16 %v621, %v619
    %v786 = vpack.c.b16 %v624, %v622
    %v787 = vpack.c.b16 %v625, %v623
    %v788 = vpack.c.b16 %v628, %v626
    %v789 = vpack.c.b16 %v629, %v627
    %v790 = vpack.c.b16 %v632, %v630
    %v791 = vpack.c.b16 %v633, %v631
    %v792 = vpack.c.b16 %v636, %v634
    %v793 = vpack.c.b16 %v637, %v635
    %v794 = vpack.c.b16 %v640, %v638
    %v795 = vpack.c.b16 %v641, %v639
    %v796 = vpack.c.b16 %v644, %v642
    %v797 = vpack.c.b16 %v645, %v643
    %v798 = vpack.c.b16 %v648, %v646
    %v799 = vpack.c.b16 %v649, %v647
    %v800 = vpack.c.b16 %v652, %v650
    %v801 = vpack.c.b16 %v653, %v651
    %v802 = vpack.c.b16 %v656, %v654
    %v803 = vpack.c.b16 %v657, %v655
    %v804 = vpack.c.b16 %v660, %v658
    %v805 = vpack.c.b16 %v661, %v659
    %v806 = vpack.c.b16 %v664, %v662
    %v807 = vpack.c.b16 %v665, %v663
    %v808 = vpack.c.b16 %v668, %v666
    %v809 = vpack.c.b16 %v669, %v667
    %v810 = vpack.c.b16 %v672, %v670
    %v811 = vpack.c.b16 %v673, %v671
    %v812 = vpack.c.b16 %v676, %v674
    %v813 = vpack.c.b16 %v677, %v675
    %v814 = vpack.c.b16 %v680, %v678
    %v815 = vpack.c.b16 %v681, %v679
    %v816 = vpack.c.b16 %v684, %v682
    %v817 = vpack.c.b16 %v685, %v683
    %v818 = vpack.c.b16 %v688, %v686
    %v819 = vpack.c.b16 %v689, %v687
    %v820 = vpack.c.b16 %v692, %v690
    %v821 = vpack.c.b16 %v693, %v691
    %950 = vmatprep.subr.bf16.mxu0 %v709
    %951 = vmatpush1.bf16.msra.mxu0 %v708
    %952 = vmatprep.subr.bf16.mxu0 %v707
    %953 = vmatpush1.bf16.msra.mxu0 %v706
    %954 = vmatprep.subr.bf16.mxu0 %v705
    %955 = vmatpush1.bf16.msra.mxu0 %v704
    %956 = vmatprep.subr.bf16.mxu0 %v703
    %957 = vmatpush1.bf16.msra.mxu0 %v702
    %958 = vmatprep.subr.bf16.mxu0 %v701
    %959 = vmatpush1.bf16.msra.mxu0 %v700
    %960 = vmatprep.subr.bf16.mxu0 %v699
    %961 = vmatpush1.bf16.msra.mxu0 %v698
    %962 = vmatprep.subr.bf16.mxu0 %v697
    %963 = vmatpush1.bf16.msra.mxu0 %v696
    %964 = vmatprep.subr.bf16.mxu0 %v695
    %965 = vmatpush1.bf16.msra.mxu0 %v694
    %966 = vmatprep.subr.bf16.mxu0 %v725
    %967 = vmatpush2.bf16.msra.mxu0 %v724
    %968 = vmatprep.subr.bf16.mxu0 %v723
    %969 = vmatpush2.bf16.msra.mxu0 %v722
    %970 = vmatprep.subr.bf16.mxu0 %v721
    %971 = vmatpush2.bf16.msra.mxu0 %v720
    %972 = vmatprep.subr.bf16.mxu0 %v719
    %973 = vmatpush2.bf16.msra.mxu0 %v718
    %974 = vmatprep.subr.bf16.mxu0 %v717
    %975 = vmatpush2.bf16.msra.mxu0 %v716
    %976 = vmatprep.subr.bf16.mxu0 %v715
    %977 = vmatpush2.bf16.msra.mxu0 %v714
    %978 = vmatprep.subr.bf16.mxu0 %v713
    %979 = vmatpush2.bf16.msra.mxu0 %v712
    %980 = vmatprep.subr.bf16.mxu0 %v711
    %981 = vmatpush2.bf16.msra.mxu0 %v710
    %982 = vmatprep.mubr.bf16.mxu0 %v295
    %983 = vmatmul.mubr.bf16.gmra.mxu0 %v294
    %v984 = vpop.f32.mrf.mxu0
    %v985 = vadd.f32 %v263, %v984
    %v986 = vpop.f32.mrf.mxu0
    %v987 = vadd.f32 %v267, %v986
    %v988 = vpop.f32.mrf.mxu0
    %v989 = vadd.f32 %v263, %v988
    %v990 = vpop.f32.mrf.mxu0
    %v991 = vadd.f32 %v267, %v990
    %992 = vdwg.mxu0
    %993 = vmatprep.subr.bf16.mxu0 %v741
    %994 = vmatpush1.bf16.msra.mxu0 %v740
    %995 = vmatprep.subr.bf16.mxu0 %v739
    %996 = vmatpush1.bf16.msra.mxu0 %v738
    %997 = vmatprep.subr.bf16.mxu0 %v737
    %998 = vmatpush1.bf16.msra.mxu0 %v736
    %999 = vmatprep.subr.bf16.mxu0 %v735
    %1000 = vmatpush1.bf16.msra.mxu0 %v734
    %1001 = vmatprep.subr.bf16.mxu0 %v733
    %1002 = vmatpush1.bf16.msra.mxu0 %v732
    %1003 = vmatprep.subr.bf16.mxu0 %v731
    %1004 = vmatpush1.bf16.msra.mxu0 %v730
    %1005 = vmatprep.subr.bf16.mxu0 %v729
    %1006 = vmatpush1.bf16.msra.mxu0 %v728
    %1007 = vmatprep.subr.bf16.mxu0 %v727
    %1008 = vmatpush1.bf16.msra.mxu0 %v726
    %1009 = vmatprep.subr.bf16.mxu0 %v757
    %1010 = vmatpush2.bf16.msra.mxu0 %v756
    %1011 = vmatprep.subr.bf16.mxu0 %v755
    %1012 = vmatpush2.bf16.msra.mxu0 %v754
    %1013 = vmatprep.subr.bf16.mxu0 %v753
    %1014 = vmatpush2.bf16.msra.mxu0 %v752
    %1015 = vmatprep.subr.bf16.mxu0 %v751
    %1016 = vmatpush2.bf16.msra.mxu0 %v750
    %1017 = vmatprep.subr.bf16.mxu0 %v749
    %1018 = vmatpush2.bf16.msra.mxu0 %v748
    %1019 = vmatprep.subr.bf16.mxu0 %v747
    %1020 = vmatpush2.bf16.msra.mxu0 %v746
    %1021 = vmatprep.subr.bf16.mxu0 %v745
    %1022 = vmatpush2.bf16.msra.mxu0 %v744
    %1023 = vmatprep.subr.bf16.mxu0 %v743
    %1024 = vmatpush2.bf16.msra.mxu0 %v742
    %1025 = vmatprep.mubr.bf16.mxu0 %v297
    %1026 = vmatmul.mubr.bf16.gmra.mxu0 %v296
    %v1027 = vpop.f32.mrf.mxu0
    %v1028 = vadd.f32 %v985, %v1027
    %v1029 = vpop.f32.mrf.mxu0
    %v1030 = vadd.f32 %v987, %v1029
    %v1031 = vpop.f32.mrf.mxu0
    %v1032 = vadd.f32 %v989, %v1031
    %v1033 = vpop.f32.mrf.mxu0
    %v1034 = vadd.f32 %v991, %v1033
    %1035 = vdwg.mxu0
    %1036 = vmatprep.subr.bf16.mxu0 %v773
    %1037 = vmatpush1.bf16.msra.mxu0 %v772
    %1038 = vmatprep.subr.bf16.mxu0 %v771
    %1039 = vmatpush1.bf16.msra.mxu0 %v770
    %1040 = vmatprep.subr.bf16.mxu0 %v769
    %1041 = vmatpush1.bf16.msra.mxu0 %v768
    %1042 = vmatprep.subr.bf16.mxu0 %v767
    %1043 = vmatpush1.bf16.msra.mxu0 %v766
    %1044 = vmatprep.subr.bf16.mxu0 %v765
    %1045 = vmatpush1.bf16.msra.mxu0 %v764
    %1046 = vmatprep.subr.bf16.mxu0 %v763
    %1047 = vmatpush1.bf16.msra.mxu0 %v762
    %1048 = vmatprep.subr.bf16.mxu0 %v761
    %1049 = vmatpush1.bf16.msra.mxu0 %v760
    %1050 = vmatprep.subr.bf16.mxu0 %v759
    %1051 = vmatpush1.bf16.msra.mxu0 %v758
    %1052 = vmatprep.subr.bf16.mxu0 %v789
    %1053 = vmatpush2.bf16.msra.mxu0 %v788
    %1054 = vmatprep.subr.bf16.mxu0 %v787
    %1055 = vmatpush2.bf16.msra.mxu0 %v786
    %1056 = vmatprep.subr.bf16.mxu0 %v785
    %1057 = vmatpush2.bf16.msra.mxu0 %v784
    %1058 = vmatprep.subr.bf16.mxu0 %v783
    %1059 = vmatpush2.bf16.msra.mxu0 %v782
    %1060 = vmatprep.subr.bf16.mxu0 %v781
    %1061 = vmatpush2.bf16.msra.mxu0 %v780
    %1062 = vmatprep.subr.bf16.mxu0 %v779
    %1063 = vmatpush2.bf16.msra.mxu0 %v778
    %1064 = vmatprep.subr.bf16.mxu0 %v777
    %1065 = vmatpush2.bf16.msra.mxu0 %v776
    %1066 = vmatprep.subr.bf16.mxu0 %v775
    %1067 = vmatpush2.bf16.msra.mxu0 %v774
    %1068 = vmatprep.mubr.bf16.mxu0 %v299
    %1069 = vmatmul.mubr.bf16.gmra.mxu0 %v298
    %v1070 = vpop.f32.mrf.mxu0
    %v1071 = vadd.f32 %v1028, %v1070
    %v1072 = vpop.f32.mrf.mxu0
    %v1073 = vadd.f32 %v1030, %v1072
    %v1074 = vpop.f32.mrf.mxu0
    %v1075 = vadd.f32 %v1032, %v1074
    %v1076 = vpop.f32.mrf.mxu0
    %v1077 = vadd.f32 %v1034, %v1076
    %1078 = vdwg.mxu0
    %1079 = vmatprep.subr.bf16.mxu0 %v805
    %1080 = vmatpush1.bf16.msra.mxu0 %v804
    %1081 = vmatprep.subr.bf16.mxu0 %v803
    %1082 = vmatpush1.bf16.msra.mxu0 %v802
    %1083 = vmatprep.subr.bf16.mxu0 %v801
    %1084 = vmatpush1.bf16.msra.mxu0 %v800
    %1085 = vmatprep.subr.bf16.mxu0 %v799
    %1086 = vmatpush1.bf16.msra.mxu0 %v798
    %1087 = vmatprep.subr.bf16.mxu0 %v797
    %1088 = vmatpush1.bf16.msra.mxu0 %v796
    %1089 = vmatprep.subr.bf16.mxu0 %v795
    %1090 = vmatpush1.bf16.msra.mxu0 %v794
    %1091 = vmatprep.subr.bf16.mxu0 %v793
    %1092 = vmatpush1.bf16.msra.mxu0 %v792
    %1093 = vmatprep.subr.bf16.mxu0 %v791
    %1094 = vmatpush1.bf16.msra.mxu0 %v790
    %1095 = vmatprep.subr.bf16.mxu0 %v821
    %1096 = vmatpush2.bf16.msra.mxu0 %v820
    %1097 = vmatprep.subr.bf16.mxu0 %v819
    %1098 = vmatpush2.bf16.msra.mxu0 %v818
    %1099 = vmatprep.subr.bf16.mxu0 %v817
    %1100 = vmatpush2.bf16.msra.mxu0 %v816
    %1101 = vmatprep.subr.bf16.mxu0 %v815
    %1102 = vmatpush2.bf16.msra.mxu0 %v814
    %1103 = vmatprep.subr.bf16.mxu0 %v813
    %1104 = vmatpush2.bf16.msra.mxu0 %v812
    %1105 = vmatprep.subr.bf16.mxu0 %v811
    %1106 = vmatpush2.bf16.msra.mxu0 %v810
    %1107 = vmatprep.subr.bf16.mxu0 %v809
    %1108 = vmatpush2.bf16.msra.mxu0 %v808
    %1109 = vmatprep.subr.bf16.mxu0 %v807
    %1110 = vmatpush2.bf16.msra.mxu0 %v806
    %1111 = vmatprep.mubr.bf16.mxu0 %v301
    %1112 = vmatmul.mubr.bf16.gmra.mxu0 %v300
    %v1113 = vpop.f32.mrf.mxu0
    %v1114 = vadd.f32 %v1071, %v1113
    %v1115 = vpop.f32.mrf.mxu0
    %v1116 = vadd.f32 %v1073, %v1115
    %v1117 = vpop.f32.mrf.mxu0
    %v1118 = vadd.f32 %v1075, %v1117
    %v1119 = vpop.f32.mrf.mxu0
    %v1120 = vadd.f32 %v1077, %v1119
    %1121 = vdwg.mxu0
    %v1122 = vmax.f32 %v1114, 0.0
    %v1123 = vmax.f32 %v1116, 0.0
    %v1124 = vmax.f32 %v1118, 0.0
    %v1125 = vmax.f32 %v1120, 0.0
    %v1126 = vpack.c.bf16 %v1124, %v1122
    %v1127 = vpack.c.bf16 %v1125, %v1123
    %v1128 = vld [vmem:[#allocation7] sm:$0xff]
    %v1129 = vld [vmem:[#allocation7 + $0x8] sm:$0xff]
    %v1130 = vld [vmem:[#allocation7 + $0x10] sm:$0xff]
    %v1131 = vld [vmem:[#allocation7 + $0x18] sm:$0xff]
    %v1132 = vld [vmem:[#allocation7 + $0x20] sm:$0xff]
    %v1133 = vld [vmem:[#allocation7 + $0x28] sm:$0xff]
    %v1134 = vld [vmem:[#allocation7 + $0x30] sm:$0xff]
    %v1135 = vld [vmem:[#allocation7 + $0x38] sm:$0xff]
    %v1136 = vld [vmem:[#allocation7 + $0x40] sm:$0xff]
    %v1137 = vld [vmem:[#allocation7 + $0x48] sm:$0xff]
    %v1138 = vld [vmem:[#allocation7 + $0x50] sm:$0xff]
    %v1139 = vld [vmem:[#allocation7 + $0x58] sm:$0xff]
    %v1140 = vld [vmem:[#allocation7 + $0x60] sm:$0xff]
    %v1141 = vld [vmem:[#allocation7 + $0x68] sm:$0xff]
    %v1142 = vld [vmem:[#allocation7 + $0x70] sm:$0xff]
    %v1143 = vld [vmem:[#allocation7 + $0x78] sm:$0xff]
    %v1144 = vld [vmem:[#allocation7 + $0x80] sm:$0xff]
    %v1145 = vld [vmem:[#allocation7 + $0x88] sm:$0xff]
    %v1146 = vld [vmem:[#allocation7 + $0x90] sm:$0xff]
    %v1147 = vld [vmem:[#allocation7 + $0x98] sm:$0xff]
    %v1148 = vld [vmem:[#allocation7 + $0xa0] sm:$0xff]
    %v1149 = vld [vmem:[#allocation7 + $0xa8] sm:$0xff]
    %v1150 = vld [vmem:[#allocation7 + $0xb0] sm:$0xff]
    %v1151 = vld [vmem:[#allocation7 + $0xb8] sm:$0xff]
    %v1152 = vld [vmem:[#allocation7 + $0xc0] sm:$0xff]
    %v1153 = vld [vmem:[#allocation7 + $0xc8] sm:$0xff]
    %v1154 = vld [vmem:[#allocation7 + $0xd0] sm:$0xff]
    %v1155 = vld [vmem:[#allocation7 + $0xd8] sm:$0xff]
    %v1156 = vld [vmem:[#allocation7 + $0xe0] sm:$0xff]
    %v1157 = vld [vmem:[#allocation7 + $0xe8] sm:$0xff]
    %v1158 = vld [vmem:[#allocation7 + $0xf0] sm:$0xff]
    %v1159 = vld [vmem:[#allocation7 + $0xf8] sm:$0xff]
    %v1160 = vld [vmem:[%s4] sm:$0x3]
    %v1162 = vlaneseq
    %v1163 = vshrl.u32 %v1162, 7
    %v1164 = vsub.s32 0, %v1163
    %v1165 = vrot.slane %v1160, %v1164
    %v1166 = vlaneseq
    %v1167 = vshrl.u32 %v1166, 7
    %v1168 = vsub.s32 1, %v1167
    %v1169 = vrot.slane %v1160, %v1168
    %v1204 = vunpack.c.l.b16 %v1128
    %v1205 = vunpack.c.h.b16 %v1128
    %v1206 = vunpack.c.l.b16 %v1129
    %v1207 = vunpack.c.h.b16 %v1129
    %v1208 = vunpack.c.l.b16 %v1130
    %v1209 = vunpack.c.h.b16 %v1130
    %v1210 = vunpack.c.l.b16 %v1131
    %v1211 = vunpack.c.h.b16 %v1131
    %v1212 = vunpack.c.l.b16 %v1132
    %v1213 = vunpack.c.h.b16 %v1132
    %v1214 = vunpack.c.l.b16 %v1133
    %v1215 = vunpack.c.h.b16 %v1133
    %v1216 = vunpack.c.l.b16 %v1134
    %v1217 = vunpack.c.h.b16 %v1134
    %v1218 = vunpack.c.l.b16 %v1135
    %v1219 = vunpack.c.h.b16 %v1135
    %v1220 = vunpack.c.l.b16 %v1136
    %v1221 = vunpack.c.h.b16 %v1136
    %v1222 = vunpack.c.l.b16 %v1137
    %v1223 = vunpack.c.h.b16 %v1137
    %v1224 = vunpack.c.l.b16 %v1138
    %v1225 = vunpack.c.h.b16 %v1138
    %v1226 = vunpack.c.l.b16 %v1139
    %v1227 = vunpack.c.h.b16 %v1139
    %v1228 = vunpack.c.l.b16 %v1140
    %v1229 = vunpack.c.h.b16 %v1140
    %v1230 = vunpack.c.l.b16 %v1141
    %v1231 = vunpack.c.h.b16 %v1141
    %v1232 = vunpack.c.l.b16 %v1142
    %v1233 = vunpack.c.h.b16 %v1142
    %v1234 = vunpack.c.l.b16 %v1143
    %v1235 = vunpack.c.h.b16 %v1143
    %v1236 = vunpack.c.l.b16 %v1144
    %v1237 = vunpack.c.h.b16 %v1144
    %v1238 = vunpack.c.l.b16 %v1145
    %v1239 = vunpack.c.h.b16 %v1145
    %v1240 = vunpack.c.l.b16 %v1146
    %v1241 = vunpack.c.h.b16 %v1146
    %v1242 = vunpack.c.l.b16 %v1147
    %v1243 = vunpack.c.h.b16 %v1147
    %v1244 = vunpack.c.l.b16 %v1148
    %v1245 = vunpack.c.h.b16 %v1148
    %v1246 = vunpack.c.l.b16 %v1149
    %v1247 = vunpack.c.h.b16 %v1149
    %v1248 = vunpack.c.l.b16 %v1150
    %v1249 = vunpack.c.h.b16 %v1150
    %v1250 = vunpack.c.l.b16 %v1151
    %v1251 = vunpack.c.h.b16 %v1151
    %v1252 = vunpack.c.l.b16 %v1152
    %v1253 = vunpack.c.h.b16 %v1152
    %v1254 = vunpack.c.l.b16 %v1153
    %v1255 = vunpack.c.h.b16 %v1153
    %v1256 = vunpack.c.l.b16 %v1154
    %v1257 = vunpack.c.h.b16 %v1154
    %v1258 = vunpack.c.l.b16 %v1155
    %v1259 = vunpack.c.h.b16 %v1155
    %v1260 = vunpack.c.l.b16 %v1156
    %v1261 = vunpack.c.h.b16 %v1156
    %v1262 = vunpack.c.l.b16 %v1157
    %v1263 = vunpack.c.h.b16 %v1157
    %v1264 = vunpack.c.l.b16 %v1158
    %v1265 = vunpack.c.h.b16 %v1158
    %v1266 = vunpack.c.l.b16 %v1159
    %v1267 = vunpack.c.h.b16 %v1159
    %v1268 = vpack.c.b16 %v1206, %v1204
    %v1269 = vpack.c.b16 %v1207, %v1205
    %v1270 = vpack.c.b16 %v1210, %v1208
    %v1271 = vpack.c.b16 %v1211, %v1209
    %v1272 = vpack.c.b16 %v1214, %v1212
    %v1273 = vpack.c.b16 %v1215, %v1213
    %v1274 = vpack.c.b16 %v1218, %v1216
    %v1275 = vpack.c.b16 %v1219, %v1217
    %v1276 = vpack.c.b16 %v1222, %v1220
    %v1277 = vpack.c.b16 %v1223, %v1221
    %v1278 = vpack.c.b16 %v1226, %v1224
    %v1279 = vpack.c.b16 %v1227, %v1225
    %v1280 = vpack.c.b16 %v1230, %v1228
    %v1281 = vpack.c.b16 %v1231, %v1229
    %v1282 = vpack.c.b16 %v1234, %v1232
    %v1283 = vpack.c.b16 %v1235, %v1233
    %v1284 = vpack.c.b16 %v1238, %v1236
    %v1285 = vpack.c.b16 %v1239, %v1237
    %v1286 = vpack.c.b16 %v1242, %v1240
    %v1287 = vpack.c.b16 %v1243, %v1241
    %v1288 = vpack.c.b16 %v1246, %v1244
    %v1289 = vpack.c.b16 %v1247, %v1245
    %v1290 = vpack.c.b16 %v1250, %v1248
    %v1291 = vpack.c.b16 %v1251, %v1249
    %v1292 = vpack.c.b16 %v1254, %v1252
    %v1293 = vpack.c.b16 %v1255, %v1253
    %v1294 = vpack.c.b16 %v1258, %v1256
    %v1295 = vpack.c.b16 %v1259, %v1257
    %v1296 = vpack.c.b16 %v1262, %v1260
    %v1297 = vpack.c.b16 %v1263, %v1261
    %v1298 = vpack.c.b16 %v1266, %v1264
    %v1299 = vpack.c.b16 %v1267, %v1265
    %1332 = vmatprep.subr.bf16.mxu0 %v1283
    %1333 = vmatpush1.bf16.msra.mxu0 %v1282
    %1334 = vmatprep.subr.bf16.mxu0 %v1281
    %1335 = vmatpush1.bf16.msra.mxu0 %v1280
    %1336 = vmatprep.subr.bf16.mxu0 %v1279
    %1337 = vmatpush1.bf16.msra.mxu0 %v1278
    %1338 = vmatprep.subr.bf16.mxu0 %v1277
    %1339 = vmatpush1.bf16.msra.mxu0 %v1276
    %1340 = vmatprep.subr.bf16.mxu0 %v1275
    %1341 = vmatpush1.bf16.msra.mxu0 %v1274
    %1342 = vmatprep.subr.bf16.mxu0 %v1273
    %1343 = vmatpush1.bf16.msra.mxu0 %v1272
    %1344 = vmatprep.subr.bf16.mxu0 %v1271
    %1345 = vmatpush1.bf16.msra.mxu0 %v1270
    %1346 = vmatprep.subr.bf16.mxu0 %v1269
    %1347 = vmatpush1.bf16.msra.mxu0 %v1268
    %1348 = vmatprep.subr.bf16.mxu0 %v1299
    %1349 = vmatpush2.bf16.msra.mxu0 %v1298
    %1350 = vmatprep.subr.bf16.mxu0 %v1297
    %1351 = vmatpush2.bf16.msra.mxu0 %v1296
    %1352 = vmatprep.subr.bf16.mxu0 %v1295
    %1353 = vmatpush2.bf16.msra.mxu0 %v1294
    %1354 = vmatprep.subr.bf16.mxu0 %v1293
    %1355 = vmatpush2.bf16.msra.mxu0 %v1292
    %1356 = vmatprep.subr.bf16.mxu0 %v1291
    %1357 = vmatpush2.bf16.msra.mxu0 %v1290
    %1358 = vmatprep.subr.bf16.mxu0 %v1289
    %1359 = vmatpush2.bf16.msra.mxu0 %v1288
    %1360 = vmatprep.subr.bf16.mxu0 %v1287
    %1361 = vmatpush2.bf16.msra.mxu0 %v1286
    %1362 = vmatprep.subr.bf16.mxu0 %v1285
    %1363 = vmatpush2.bf16.msra.mxu0 %v1284
    %1364 = vmatprep.mubr.bf16.mxu0 %v1127
    %1365 = vmatmul.mubr.bf16.gmra.mxu0 %v1126
    %v1366 = vpop.f32.mrf.mxu0
    %v1367 = vadd.f32 %v1165, %v1366
    %v1368 = vpop.f32.mrf.mxu0
    %v1369 = vadd.f32 %v1169, %v1368
    %v1370 = vpop.f32.mrf.mxu0
    %v1371 = vadd.f32 %v1165, %v1370
    %v1372 = vpop.f32.mrf.mxu0
    %v1373 = vadd.f32 %v1169, %v1372
    %1374 = vdwg.mxu0
    %v1375 = vmax.f32 %v1367, 0.0
    %v1376 = vmax.f32 %v1369, 0.0
    %v1377 = vmax.f32 %v1371, 0.0
    %v1378 = vmax.f32 %v1373, 0.0
    %v1379 = vpack.c.bf16 %v1377, %v1375
    %v1380 = vpack.c.bf16 %v1378, %v1376
    %v1381 = vld [vmem:[#allocation8] sm:$0xf]
    %v1382 = vld [vmem:[#allocation8 + $0x4] sm:$0xf]
    %v1383 = vld [vmem:[#allocation8 + $0x8] sm:$0xf]
    %v1384 = vld [vmem:[#allocation8 + $0xc] sm:$0xf]
    %v1385 = vld [vmem:[#allocation8 + $0x10] sm:$0xf]
    %v1386 = vld [vmem:[#allocation8 + $0x14] sm:$0xf]
    %v1387 = vld [vmem:[#allocation8 + $0x18] sm:$0xf]
    %v1388 = vld [vmem:[#allocation8 + $0x1c] sm:$0xf]
    %v1389 = vld [vmem:[#allocation8 + $0x20] sm:$0xf]
    %v1390 = vld [vmem:[#allocation8 + $0x24] sm:$0xf]
    %v1391 = vld [vmem:[#allocation8 + $0x28] sm:$0xf]
    %v1392 = vld [vmem:[#allocation8 + $0x2c] sm:$0xf]
    %v1393 = vld [vmem:[#allocation8 + $0x30] sm:$0xf]
    %v1394 = vld [vmem:[#allocation8 + $0x34] sm:$0xf]
    %v1395 = vld [vmem:[#allocation8 + $0x38] sm:$0xf]
    %v1396 = vld [vmem:[#allocation8 + $0x3c] sm:$0xf]
    %v1397 = vld [vmem:[#allocation8 + $0x40] sm:$0xf]
    %v1398 = vld [vmem:[#allocation8 + $0x44] sm:$0xf]
    %v1399 = vld [vmem:[#allocation8 + $0x48] sm:$0xf]
    %v1400 = vld [vmem:[#allocation8 + $0x4c] sm:$0xf]
    %v1401 = vld [vmem:[#allocation8 + $0x50] sm:$0xf]
    %v1402 = vld [vmem:[#allocation8 + $0x54] sm:$0xf]
    %v1403 = vld [vmem:[#allocation8 + $0x58] sm:$0xf]
    %v1404 = vld [vmem:[#allocation8 + $0x5c] sm:$0xf]
    %v1405 = vld [vmem:[#allocation8 + $0x60] sm:$0xf]
    %v1406 = vld [vmem:[#allocation8 + $0x64] sm:$0xf]
    %v1407 = vld [vmem:[#allocation8 + $0x68] sm:$0xf]
    %v1408 = vld [vmem:[#allocation8 + $0x6c] sm:$0xf]
    %v1409 = vld [vmem:[#allocation8 + $0x70] sm:$0xf]
    %v1410 = vld [vmem:[#allocation8 + $0x74] sm:$0xf]
    %v1411 = vld [vmem:[#allocation8 + $0x78] sm:$0xf]
    %v1412 = vld [vmem:[#allocation8 + $0x7c] sm:$0xf]
    %v1413 = vld [vmem:[%s6] sm:$0x1]
    %v1415 = vlaneseq
    %v1416 = vshrl.u32 %v1415, 7
    %v1417 = vsub.s32 0, %v1416
    %v1418 = vrot.slane %v1413, %v1417
    %v1452 = vunpack.c.l.b16 %v1381
    %v1453 = vunpack.c.l.b16 %v1382
    %v1454 = vunpack.c.l.b16 %v1383
    %v1455 = vunpack.c.l.b16 %v1384
    %v1456 = vunpack.c.l.b16 %v1385
    %v1457 = vunpack.c.l.b16 %v1386
    %v1458 = vunpack.c.l.b16 %v1387
    %v1459 = vunpack.c.l.b16 %v1388
    %v1460 = vunpack.c.l.b16 %v1389
    %v1461 = vunpack.c.l.b16 %v1390
    %v1462 = vunpack.c.l.b16 %v1391
    %v1463 = vunpack.c.l.b16 %v1392
    %v1464 = vunpack.c.l.b16 %v1393
    %v1465 = vunpack.c.l.b16 %v1394
    %v1466 = vunpack.c.l.b16 %v1395
    %v1467 = vunpack.c.l.b16 %v1396
    %v1468 = vunpack.c.l.b16 %v1397
    %v1469 = vunpack.c.l.b16 %v1398
    %v1470 = vunpack.c.l.b16 %v1399
    %v1471 = vunpack.c.l.b16 %v1400
    %v1472 = vunpack.c.l.b16 %v1401
    %v1473 = vunpack.c.l.b16 %v1402
    %v1474 = vunpack.c.l.b16 %v1403
    %v1475 = vunpack.c.l.b16 %v1404
    %v1476 = vunpack.c.l.b16 %v1405
    %v1477 = vunpack.c.l.b16 %v1406
    %v1478 = vunpack.c.l.b16 %v1407
    %v1479 = vunpack.c.l.b16 %v1408
    %v1480 = vunpack.c.l.b16 %v1409
    %v1481 = vunpack.c.l.b16 %v1410
    %v1482 = vunpack.c.l.b16 %v1411
    %v1483 = vunpack.c.l.b16 %v1412
    %v1484 = vpack.c.b16 %v1453, %v1452
    %v1485 = vpack.c.b16 %v1455, %v1454
    %v1486 = vpack.c.b16 %v1457, %v1456
    %v1487 = vpack.c.b16 %v1459, %v1458
    %v1488 = vpack.c.b16 %v1461, %v1460
    %v1489 = vpack.c.b16 %v1463, %v1462
    %v1490 = vpack.c.b16 %v1465, %v1464
    %v1491 = vpack.c.b16 %v1467, %v1466
    %v1492 = vpack.c.b16 %v1469, %v1468
    %v1493 = vpack.c.b16 %v1471, %v1470
    %v1494 = vpack.c.b16 %v1473, %v1472
    %v1495 = vpack.c.b16 %v1475, %v1474
    %v1496 = vpack.c.b16 %v1477, %v1476
    %v1497 = vpack.c.b16 %v1479, %v1478
    %v1498 = vpack.c.b16 %v1481, %v1480
    %v1499 = vpack.c.b16 %v1483, %v1482
    %1516 = vmatprep.subr.bf16.mxu0 0
    %1517 = vmatpush1.bf16.msra.mxu0 %v1491
    %1518 = vmatprep.subr.bf16.mxu0 0
    %1519 = vmatpush1.bf16.msra.mxu0 %v1490
    %1520 = vmatprep.subr.bf16.mxu0 0
    %1521 = vmatpush1.bf16.msra.mxu0 %v1489
    %1522 = vmatprep.subr.bf16.mxu0 0
    %1523 = vmatpush1.bf16.msra.mxu0 %v1488
    %1524 = vmatprep.subr.bf16.mxu0 0
    %1525 = vmatpush1.bf16.msra.mxu0 %v1487
    %1526 = vmatprep.subr.bf16.mxu0 0
    %1527 = vmatpush1.bf16.msra.mxu0 %v1486
    %1528 = vmatprep.subr.bf16.mxu0 0
    %1529 = vmatpush1.bf16.msra.mxu0 %v1485
    %1530 = vmatprep.subr.bf16.mxu0 0
    %1531 = vmatpush1.bf16.msra.mxu0 %v1484
    %1532 = vmatprep.subr.bf16.mxu0 0
    %1533 = vmatpush2.bf16.msra.mxu0 %v1499
    %1534 = vmatprep.subr.bf16.mxu0 0
    %1535 = vmatpush2.bf16.msra.mxu0 %v1498
    %1536 = vmatprep.subr.bf16.mxu0 0
    %1537 = vmatpush2.bf16.msra.mxu0 %v1497
    %1538 = vmatprep.subr.bf16.mxu0 0
    %1539 = vmatpush2.bf16.msra.mxu0 %v1496
    %1540 = vmatprep.subr.bf16.mxu0 0
    %1541 = vmatpush2.bf16.msra.mxu0 %v1495
    %1542 = vmatprep.subr.bf16.mxu0 0
    %1543 = vmatpush2.bf16.msra.mxu0 %v1494
    %1544 = vmatprep.subr.bf16.mxu0 0
    %1545 = vmatpush2.bf16.msra.mxu0 %v1493
    %1546 = vmatprep.subr.bf16.mxu0 0
    %1547 = vmatpush2.bf16.msra.mxu0 %v1492
    %1548 = vmatprep.mubr.bf16.mxu0 %v1380
    %1549 = vmatmul.mubr.bf16.gmra.mxu0 %v1379
    %v1550 = vpop.f32.mrf.mxu0
    %v1551 = vadd.f32 %v1418, %v1550
    %v1552 = vpop.f32.mrf.mxu0
    %v1553 = vpop.f32.mrf.mxu0
    %v1554 = vadd.f32 %v1418, %v1553
    %v1555 = vpop.f32.mrf.mxu0
    %1556 = vdwg.mxu0
    %v1557 = vmax.f32 %v1551, 0.0
    %v1558 = vmax.f32 %v1554, 0.0
    %v1559 = vpack.c.bf16 %v1558, %v1557
    %v1560 = vld [vmem:[#allocation10] sm:$0xf]
    %v1561 = vld [vmem:[#allocation10 + $0x4] sm:$0xf]
    %v1562 = vld [vmem:[#allocation10 + $0x8] sm:$0xf]
    %v1563 = vld [vmem:[#allocation10 + $0xc] sm:$0xf]
    %v1564 = vld [vmem:[#allocation10 + $0x10] sm:$0xf]
    %v1565 = vld [vmem:[#allocation10 + $0x14] sm:$0xf]
    %v1566 = vld [vmem:[#allocation10 + $0x18] sm:$0xf]
    %v1567 = vld [vmem:[#allocation10 + $0x1c] sm:$0xf]
    %v1568 = vld [vmem:[#allocation10 + $0x20] sm:$0xf]
    %v1569 = vld [vmem:[#allocation10 + $0x24] sm:$0xf]
    %v1570 = vld [vmem:[#allocation10 + $0x28] sm:$0xf]
    %v1571 = vld [vmem:[#allocation10 + $0x2c] sm:$0xf]
    %v1572 = vld [vmem:[#allocation10 + $0x30] sm:$0xf]
    %v1573 = vld [vmem:[#allocation10 + $0x34] sm:$0xf]
    %v1574 = vld [vmem:[#allocation10 + $0x38] sm:$0xf]
    %v1575 = vld [vmem:[#allocation10 + $0x3c] sm:$0xf]
    %v1576 = vld [vmem:[%s8] sm:$0x1]
    %v1578 = vlaneseq
    %v1579 = vshrl.u32 %v1578, 7
    %v1580 = vsub.s32 0, %v1579
    %v1581 = vrot.slane %v1576, %v1580
    %v1599 = vunpack.c.l.b16 %v1560
    %v1600 = vunpack.c.l.b16 %v1561
    %v1601 = vunpack.c.l.b16 %v1562
    %v1602 = vunpack.c.l.b16 %v1563
    %v1603 = vunpack.c.l.b16 %v1564
    %v1604 = vunpack.c.l.b16 %v1565
    %v1605 = vunpack.c.l.b16 %v1566
    %v1606 = vunpack.c.l.b16 %v1567
    %v1607 = vunpack.c.l.b16 %v1568
    %v1608 = vunpack.c.l.b16 %v1569
    %v1609 = vunpack.c.l.b16 %v1570
    %v1610 = vunpack.c.l.b16 %v1571
    %v1611 = vunpack.c.l.b16 %v1572
    %v1612 = vunpack.c.l.b16 %v1573
    %v1613 = vunpack.c.l.b16 %v1574
    %v1614 = vunpack.c.l.b16 %v1575
    %v1615 = vpack.c.b16 %v1600, %v1599
    %v1616 = vpack.c.b16 %v1602, %v1601
    %v1617 = vpack.c.b16 %v1604, %v1603
    %v1618 = vpack.c.b16 %v1606, %v1605
    %v1619 = vpack.c.b16 %v1608, %v1607
    %v1620 = vpack.c.b16 %v1610, %v1609
    %v1621 = vpack.c.b16 %v1612, %v1611
    %v1622 = vpack.c.b16 %v1614, %v1613
    %1631 = vmatprep.subr.bf16.mxu0 0
    %1632 = vmatpush1.bf16.msra.mxu0 %v1622
    %1633 = vmatprep.subr.bf16.mxu0 0
    %1634 = vmatpush1.bf16.msra.mxu0 %v1621
    %1635 = vmatprep.subr.bf16.mxu0 0
    %1636 = vmatpush1.bf16.msra.mxu0 %v1620
    %1637 = vmatprep.subr.bf16.mxu0 0
    %1638 = vmatpush1.bf16.msra.mxu0 %v1619
    %1639 = vmatprep.subr.bf16.mxu0 0
    %1640 = vmatpush1.bf16.msra.mxu0 %v1618
    %1641 = vmatprep.subr.bf16.mxu0 0
    %1642 = vmatpush1.bf16.msra.mxu0 %v1617
    %1643 = vmatprep.subr.bf16.mxu0 0
    %1644 = vmatpush1.bf16.msra.mxu0 %v1616
    %1645 = vmatprep.subr.bf16.mxu0 0
    %1646 = vmatpush1.bf16.msra.mxu0 %v1615
    %1647 = vmatprep.subr.bf16.mxu0 0
    %1648 = vmatpush2.bf16.msra.mxu0 0
    %1649 = vmatprep.subr.bf16.mxu0 0
    %1650 = vmatpush2.bf16.msra.mxu0 0
    %1651 = vmatprep.subr.bf16.mxu0 0
    %1652 = vmatpush2.bf16.msra.mxu0 0
    %1653 = vmatprep.subr.bf16.mxu0 0
    %1654 = vmatpush2.bf16.msra.mxu0 0
    %1655 = vmatprep.subr.bf16.mxu0 0
    %1656 = vmatpush2.bf16.msra.mxu0 0
    %1657 = vmatprep.subr.bf16.mxu0 0
    %1658 = vmatpush2.bf16.msra.mxu0 0
    %1659 = vmatprep.subr.bf16.mxu0 0
    %1660 = vmatpush2.bf16.msra.mxu0 0
    %1661 = vmatprep.subr.bf16.mxu0 0
    %1662 = vmatpush2.bf16.msra.mxu0 0
    %1663 = vmatprep.mubr.bf16.mxu0 0
    %1664 = vmatmul.mubr.bf16.gmra.mxu0 %v1559
    %v1665 = vpop.f32.mrf.mxu0
    %v1666 = vadd.f32 %v1581, %v1665
    %v1667 = vpop.f32.mrf.mxu0
    %v1668 = vpop.f32.mrf.mxu0
    %v1669 = vadd.f32 %v1581, %v1668
    %v1670 = vpop.f32.mrf.mxu0
    %1671 = vdwg.mxu0
    %v1672 = vmax.f32 %v1666, 0.0
    %v1673 = vmax.f32 %v1669, 0.0
    %v1674 = vpack.c.bf16 %v1673, %v1672
    %v1675 = vld [vmem:[#allocation11] sm:$0xf]
    %v1676 = vld [vmem:[#allocation11 + $0x4] sm:$0xf]
    %v1677 = vld [vmem:[#allocation11 + $0x8] sm:$0xf]
    %v1678 = vld [vmem:[#allocation11 + $0xc] sm:$0xf]
    %v1679 = vld [vmem:[#allocation11 + $0x10] sm:$0xf]
    %v1680 = vld [vmem:[#allocation11 + $0x14] sm:$0xf]
    %v1681 = vld [vmem:[#allocation11 + $0x18] sm:$0xf]
    %v1682 = vld [vmem:[#allocation11 + $0x1c] sm:$0xf]
    %v1683 = vld [vmem:[#allocation11 + $0x20] sm:$0xf]
    %v1684 = vld [vmem:[#allocation11 + $0x24] sm:$0xf]
    %v1685 = vld [vmem:[#allocation11 + $0x28] sm:$0xf]
    %v1686 = vld [vmem:[#allocation11 + $0x2c] sm:$0xf]
    %v1687 = vld [vmem:[#allocation11 + $0x30] sm:$0xf]
    %v1688 = vld [vmem:[#allocation11 + $0x34] sm:$0xf]
    %v1689 = vld [vmem:[#allocation11 + $0x38] sm:$0xf]
    %v1690 = vld [vmem:[#allocation11 + $0x3c] sm:$0xf]
    %v1691 = vld [vmem:[%s10] sm:$0x1]
    %v1693 = vlaneseq
    %v1694 = vshrl.u32 %v1693, 7
    %v1695 = vsub.s32 0, %v1694
    %v1696 = vrot.slane %v1691, %v1695
    %v1714 = vunpack.c.l.b16 %v1675
    %v1715 = vunpack.c.l.b16 %v1676
    %v1716 = vunpack.c.l.b16 %v1677
    %v1717 = vunpack.c.l.b16 %v1678
    %v1718 = vunpack.c.l.b16 %v1679
    %v1719 = vunpack.c.l.b16 %v1680
    %v1720 = vunpack.c.l.b16 %v1681
    %v1721 = vunpack.c.l.b16 %v1682
    %v1722 = vunpack.c.l.b16 %v1683
    %v1723 = vunpack.c.l.b16 %v1684
    %v1724 = vunpack.c.l.b16 %v1685
    %v1725 = vunpack.c.l.b16 %v1686
    %v1726 = vunpack.c.l.b16 %v1687
    %v1727 = vunpack.c.l.b16 %v1688
    %v1728 = vunpack.c.l.b16 %v1689
    %v1729 = vunpack.c.l.b16 %v1690
    %v1730 = vpack.c.b16 %v1715, %v1714
    %v1731 = vpack.c.b16 %v1717, %v1716
    %v1732 = vpack.c.b16 %v1719, %v1718
    %v1733 = vpack.c.b16 %v1721, %v1720
    %v1734 = vpack.c.b16 %v1723, %v1722
    %v1735 = vpack.c.b16 %v1725, %v1724
    %v1736 = vpack.c.b16 %v1727, %v1726
    %v1737 = vpack.c.b16 %v1729, %v1728
    %1746 = vmatprep.subr.bf16.mxu0 0
    %1747 = vmatpush1.bf16.msra.mxu0 %v1737
    %1748 = vmatprep.subr.bf16.mxu0 0
    %1749 = vmatpush1.bf16.msra.mxu0 %v1736
    %1750 = vmatprep.subr.bf16.mxu0 0
    %1751 = vmatpush1.bf16.msra.mxu0 %v1735
    %1752 = vmatprep.subr.bf16.mxu0 0
    %1753 = vmatpush1.bf16.msra.mxu0 %v1734
    %1754 = vmatprep.subr.bf16.mxu0 0
    %1755 = vmatpush1.bf16.msra.mxu0 %v1733
    %1756 = vmatprep.subr.bf16.mxu0 0
    %1757 = vmatpush1.bf16.msra.mxu0 %v1732
    %1758 = vmatprep.subr.bf16.mxu0 0
    %1759 = vmatpush1.bf16.msra.mxu0 %v1731
    %1760 = vmatprep.subr.bf16.mxu0 0
    %1761 = vmatpush1.bf16.msra.mxu0 %v1730
    %1762 = vmatprep.subr.bf16.mxu0 0
    %1763 = vmatpush2.bf16.msra.mxu0 0
    %1764 = vmatprep.subr.bf16.mxu0 0
    %1765 = vmatpush2.bf16.msra.mxu0 0
    %1766 = vmatprep.subr.bf16.mxu0 0
    %1767 = vmatpush2.bf16.msra.mxu0 0
    %1768 = vmatprep.subr.bf16.mxu0 0
    %1769 = vmatpush2.bf16.msra.mxu0 0
    %1770 = vmatprep.subr.bf16.mxu0 0
    %1771 = vmatpush2.bf16.msra.mxu0 0
    %1772 = vmatprep.subr.bf16.mxu0 0
    %1773 = vmatpush2.bf16.msra.mxu0 0
    %1774 = vmatprep.subr.bf16.mxu0 0
    %1775 = vmatpush2.bf16.msra.mxu0 0
    %1776 = vmatprep.subr.bf16.mxu0 0
    %1777 = vmatpush2.bf16.msra.mxu0 0
    %1778 = vmatprep.mubr.bf16.mxu0 0
    %1779 = vmatmul.mubr.bf16.gmra.mxu0 %v1674
    %v1780 = vpop.f32.mrf.mxu0
    %v1781 = vadd.f32 %v1696, %v1780
    %v1782 = vpop.f32.mrf.mxu0
    %v1783 = vpop.f32.mrf.mxu0
    %v1784 = vadd.f32 %v1696, %v1783
    %v1785 = vpop.f32.mrf.mxu0
    %1786 = vdwg.mxu0
    %1787 = vst [vmem:[#allocation13] sm:$0xff] %v1781
    %1788 = vst [vmem:[#allocation13 + $0x8] sm:$0xff] %v1784
    // Predicated region
    $region70: #{tpu_custom_call.1} parent=1 // pred_check
      _
    $region71: #{tpu_custom_call.1} parent=1 // pred_check_branch
      %1790 = sbr.rel (0) target = $region73
    $region72: #{tpu_custom_call.1} parent=1 // pred_region
      %s1792 = ssub.s32 256, 256
      %1793 = vsyncadd [#allocation4], %s1792
      %s1794 = sshll.u32 [#allocation13], 4
      %s1795 = int_to_ptr.vmem [resolvable:$true] %s1794
      %1800 = dma.vmem_to_hbm [thread:$0]  %s1795, 256, %s11, [#allocation4], 128, 128, 8
    $region73: #{tpu_custom_call.1} parent=1 // pred_fallthru
      _
    // Predicated region
    $region74: #{tpu_custom_call.1} parent=1 // pred_check
      _
    $region75: #{tpu_custom_call.1} parent=1 // pred_check_branch
      %1802 = sbr.rel (0) target = $region77
    $region76: #{tpu_custom_call.1} parent=1 // pred_region
      %1803 = dma.done [#allocation4], 256
    $region77: #{tpu_custom_call.1} parent=1 // pred_fallthru
      _
    %1804 = vsyncpa [#allocation3], 1
    %1805 = vsyncpa [#allocation6], 1
    %1806 = vsyncpa [#allocation9], 1
    %1807 = vsyncpa [#allocation12], 1
    %1808 = vsyncpa [#allocation4], 1

</llo_original>
